<compile_context>
chip_gen: v7x
topology: tpu7x:2x2x1
jax: 0.10.0
libtpu: 0.0.40
codegen_flags: <defaults>
</compile_context>

<pallas_src>
import functools

import jax
import jax.numpy as jnp
from jax.experimental import pallas as pl
from jax.experimental.pallas import tpu as pltpu


def _round_up(x, m):
    return (x + m - 1) // m * m


# --------------------------------------------------------------------------
# Pass 1: fused f32 -> int8 down-cast + column-sum (out-degree) over A.
# grid = (col tiles j [parallel], row tiles r [arbitrary]); out-degree block
# index is constant across r -> output-resident accumulator.
# --------------------------------------------------------------------------
def _prepare_kernel(a_ref, a_q_ref, deg_ref):
    r = pl.program_id(1)

    @pl.when(r == 0)
    def _init():
        deg_ref[...] = jnp.zeros_like(deg_ref)

    a = a_ref[...]                                   # (tr, tc) f32, read once
    a_q_ref[...] = a.astype(jnp.int8)                # 0/1 exact
    deg_ref[...] += jnp.sum(a, axis=0, keepdims=True)  # partial column sums


# --------------------------------------------------------------------------
# Pass 2: fused relu(norm_dst * (A @ [Xs | 1]) @ W_pad + b).
# --------------------------------------------------------------------------
def _gcn_fused_kernel(a_ref, x_ref, w_ref, b_ref, o_ref, acc_ref,
                      *, f_in, tile_k, x_resident):
    k = pl.program_id(1)

    @pl.when(k == 0)
    def _init():
        acc_ref[...] = jnp.zeros_like(acc_ref)

    # int8 {0,1} -> bf16 is lossless; the VPU cast hides under the (dominant)
    # A DMA, and the MXU runs its native bf16 path with f32 accumulation.
    a = a_ref[...].astype(jnp.bfloat16)              # (tm, tk)

    if x_resident:
        start = pl.multiple_of(k * tile_k, tile_k)
        x = x_ref[pl.ds(start, tile_k), :]           # (tk, f_in + 1) bf16
    else:
        x = x_ref[...]                               # (tk, f_in + 1) bf16

    acc_ref[...] += jnp.dot(a, x, preferred_element_type=jnp.float32)

    @pl.when(k == pl.num_programs(1) - 1)
    def _finalize():
        acc = acc_ref[...]                           # (tm, f_in + 1) f32
        deg = acc[:, f_in:f_in + 1]                  # ones-column = in-degree
        norm_dst = jax.lax.rsqrt(jnp.maximum(deg, 1.0))
        # W row f_in is zero, so the degree column contributes nothing here.
        out = jnp.dot(acc, w_ref[...], preferred_element_type=jnp.float32)
        out = out * norm_dst + b_ref[...]
        o_ref[...] = jnp.maximum(out, 0.0)


@functools.partial(jax.jit, static_argnames=("tile_m", "tile_k"))
def gcn_forward(adj, feats, weight, bias, *, tile_m=512, tile_k=512):
    """GraphConv(norm='both', bias=True) followed by ReLU, fused on TPU."""
    assert tile_m >= 128 and tile_m % 128 == 0
    assert tile_k >= 128 and tile_k % 128 == 0

    n, f_in = feats.shape
    f_out = weight.shape[1]

    # ---- tiling / padding (all Python ints at trace time) -----------------
    n_pad = _round_up(n, 128)
    tm = min(tile_m, n_pad)
    tk = min(tile_k, n_pad)
    while n_pad % tm:
        tm -= 128
    while n_pad % tk:
        tk -= 128

    adj = adj.astype(jnp.float32)
    feats = feats.astype(jnp.float32)
    if n_pad != n:
        # Padded rows/cols of A are zero -> contribute nothing; padded output
        # rows hold relu(bias) and are sliced off below. (For a static graph,
        # hoist the pad + prepare pass out of the per-layer path.)
        adj = jnp.pad(adj, ((0, n_pad - n), (0, n_pad - n)))
        feats = jnp.pad(feats, ((0, n_pad - n), (0, 0)))

    # ---- pass 1: A(f32) -> A(int8) + out-degree in a single read of A -----
    adj_i8, out_deg = pl.pallas_call(
        _prepare_kernel,
        out_shape=(jax.ShapeDtypeStruct((n_pad, n_pad), jnp.int8),
                   jax.ShapeDtypeStruct((1, n_pad), jnp.float32)),
        grid_spec=pltpu.PrefetchScalarGridSpec(
            num_scalar_prefetch=0,
            grid=(n_pad // tk, n_pad // tm),           # (col tiles, row tiles)
            in_specs=[pl.BlockSpec((tm, tk), lambda j, r: (r, j))],
            out_specs=[pl.BlockSpec((tm, tk), lambda j, r: (r, j)),
                       pl.BlockSpec((1, tk), lambda j, r: (0, j))],
        ),
        compiler_params=pltpu.CompilerParams(
            dimension_semantics=("parallel", "arbitrary"),
            vmem_limit_bytes=48 * 1024 * 1024,
        ),
    )(adj)

    # ---- X prep: fold norm_src once, append ones column, cast to bf16 -----
    f_aug = f_in + 1
    norm_src = jax.lax.rsqrt(jnp.maximum(out_deg.reshape(n_pad, 1), 1.0))
    x_scaled = (feats * norm_src).astype(jnp.bfloat16)
    x_aug = jnp.concatenate(
        [x_scaled, jnp.ones((n_pad, 1), jnp.bfloat16)], axis=1)   # (n_pad, f_aug)

    # ---- W / bias: zero-pad F_out to a multiple of 128 (lane-dense stores);
    # the extra W row (matching the ones column) stays zero. ----------------
    f_out_p = _round_up(f_out, 128)
    w_p = jnp.zeros((f_aug, f_out_p), jnp.float32)
    w_p = w_p.at[:f_in, :f_out].set(weight.astype(jnp.float32))
    b_p = jnp.zeros((1, f_out_p), jnp.float32)
    b_p = b_p.at[:, :f_out].set(bias.astype(jnp.float32))

    # ---- X residency: keep X fully in VMEM if it fits a conservative budget
    # (safe on v5e/v6e/v7x alike); otherwise stream a (tk, f_aug) block. ----
    x_resident = n_pad * f_aug * 2 <= 8 * 1024 * 1024
    if x_resident:
        x_spec = pl.BlockSpec((n_pad, f_aug), lambda i, k: (0, 0))
    else:
        x_spec = pl.BlockSpec((tk, f_aug), lambda i, k: (k, 0))

    # ---- pass 2: fused aggregation + projection + norm + bias + relu ------
    out_p = pl.pallas_call(
        functools.partial(_gcn_fused_kernel,
                          f_in=f_in, tile_k=tk, x_resident=x_resident),
        out_shape=jax.ShapeDtypeStruct((n_pad, f_out_p), jnp.float32),
        grid_spec=pltpu.PrefetchScalarGridSpec(
            num_scalar_prefetch=0,
            grid=(n_pad // tm, n_pad // tk),
            in_specs=[
                # A tile, streamed once as int8 (1 B/elem).
                pl.BlockSpec((tm, tk), lambda i, k: (i, k)),
                # X (resident or per-K-block).
                x_spec,
                # W and bias: constant index_map -> resident in VMEM.
                pl.BlockSpec((f_aug, f_out_p), lambda i, k: (0, 0)),
                pl.BlockSpec((1, f_out_p), lambda i, k: (0, 0)),
            ],
            out_specs=pl.BlockSpec((tm, f_out_p), lambda i, k: (i, 0)),
            scratch_shapes=[pltpu.VMEM((tm, f_aug), jnp.float32)],
        ),
        compiler_params=pltpu.CompilerParams(
            dimension_semantics=("parallel", "arbitrary"),
            vmem_limit_bytes=48 * 1024 * 1024,
        ),
    )(adj_i8, x_aug, w_p, b_p)

    return out_p[:n, :f_out]


def _reference(adj, feats, weight, bias):
    in_deg = jnp.sum(adj, axis=1)
    out_deg = jnp.sum(adj, axis=0)
    ns = jax.lax.rsqrt(jnp.maximum(out_deg, 1.0))
    nd = jax.lax.rsqrt(jnp.maximum(in_deg, 1.0))
    h = feats * ns[:, None]
    agg = adj @ h
    out = (agg @ weight) * nd[:, None] + bias[None, :]
    return jnp.maximum(out, 0.0)


if __name__ == "__main__":
    N, F_IN, F_OUT = 256, 32, 64

    key = jax.random.PRNGKey(0)
    k_adj, k_feat, k_w, k_b = jax.random.split(key, 4)

    # Random sparse-ish directed graph with self loops (dense 0/1 adjacency).
    adj = (jax.random.uniform(k_adj, (N, N)) < 0.1).astype(jnp.float32)
    adj = jnp.maximum(adj, jnp.eye(N, dtype=jnp.float32))

    feats = jax.random.normal(k_feat, (N, F_IN), dtype=jnp.float32)

    # Xavier-uniform-like weight init (matches DGL GraphConv init scheme).
    limit = (6.0 / (F_IN + F_OUT)) ** 0.5
    weight = jax.random.uniform(k_w, (F_IN, F_OUT), jnp.float32, -limit, limit)
    bias = 0.1 * jax.random.normal(k_b, (F_OUT,), dtype=jnp.float32)

    out = gcn_forward(adj, feats, weight, bias)
    out = jax.block_until_ready(out)

    ref = _reference(adj, feats, weight, bias)
    assert out.shape == (N, F_OUT)
    # X travels through the MXU in bf16 (perf choice from the review), so the
    # comparison against the pure-f32 reference uses a bf16-appropriate bound.
    max_err = float(jnp.max(jnp.abs(out - ref)))
    assert jnp.allclose(out, ref, atol=3e-2, rtol=3e-2), max_err

    print("KERNEL_OK")
</pallas_src>

<mosaic_0001>
module attributes {stable_mosaic.version = 11 : i64} {
  func.func @_prepare_kernel(%arg0: i32, %arg1: i32, %arg2: memref<256x256xf32, #tpu.memory_space<vmem>>, %arg3: memref<256x256xi8, #tpu.memory_space<vmem>>, %arg4: memref<1x256xf32, #tpu.memory_space<vmem>>) attributes {dimension_semantics = [#tpu.dimension_semantics<parallel>, #tpu.dimension_semantics<arbitrary>], iteration_bounds = array<i64: 1, 1>, scalar_prefetch = 0 : i64, scratch_operands = 0 : i64, tpu.core_type = #tpu.core_type<tc>, window_params = [{transform_indices = @transform_0, window_bounds = array<i64: 256, 256>}, {transform_indices = @transform_1, window_bounds = array<i64: 256, 256>}, {transform_indices = @transform_2, window_bounds = array<i64: 1, 256>}]} {
    %c0_i32 = arith.constant 0 : i32
    %0 = arith.cmpi eq, %arg1, %c0_i32 : i32
    %1 = arith.extui %0 : i1 to i32
    %c0_i32_0 = arith.constant 0 : i32
    %2 = arith.cmpi ne, %1, %c0_i32_0 : i32
    scf.if %2 {
      %cst_8 = arith.constant 0.000000e+00 : f32
      %11 = vector.broadcast %cst_8 : f32 to vector<1x256xf32>
      %c0_9 = arith.constant 0 : index
      %c0_10 = arith.constant 0 : index
      %12 = vector.load %arg4[%c0_9, %c0_10] : memref<1x256xf32, #tpu.memory_space<vmem>>, vector<1x256xf32>
      tpu.vector_store %arg4[%c0_9, %c0_10], %11 {strides = array<i32>} : memref<1x256xf32, #tpu.memory_space<vmem>>, vector<1x256xf32>,
    } else {
    }
    %c0 = arith.constant 0 : index
    %c0_1 = arith.constant 0 : index
    %3 = vector.load %arg2[%c0, %c0_1] : memref<256x256xf32, #tpu.memory_space<vmem>>, vector<256x256xf32>
    %4 = arith.fptosi %3 : vector<256x256xf32> to vector<256x256xi8>
    %c0_2 = arith.constant 0 : index
    %c0_3 = arith.constant 0 : index
    %5 = vector.load %arg3[%c0_2, %c0_3] : memref<256x256xi8, #tpu.memory_space<vmem>>, vector<256x256xi8>
    tpu.vector_store %arg3[%c0_2, %c0_3], %4 {strides = array<i32>} : memref<256x256xi8, #tpu.memory_space<vmem>>, vector<256x256xi8>,
    %c0_4 = arith.constant 0 : index
    %c0_5 = arith.constant 0 : index
    %6 = vector.load %arg4[%c0_4, %c0_5] : memref<1x256xf32, #tpu.memory_space<vmem>>, vector<1x256xf32>
    %cst = arith.constant dense<0.000000e+00> : vector<256xf32>
    %7 = vector.multi_reduction <add>, %3, %cst [0] : vector<256x256xf32> to vector<256xf32>
    %8 = vector.shape_cast %7 : vector<256xf32> to vector<1x256xf32>
    %9 = arith.addf %6, %8 : vector<1x256xf32>
    %c0_6 = arith.constant 0 : index
    %c0_7 = arith.constant 0 : index
    %10 = vector.load %arg4[%c0_6, %c0_7] : memref<1x256xf32, #tpu.memory_space<vmem>>, vector<1x256xf32>
    tpu.vector_store %arg4[%c0_6, %c0_7], %9 {strides = array<i32>} : memref<1x256xf32, #tpu.memory_space<vmem>>, vector<1x256xf32>,
    return
  }
  func.func @transform_0(%arg0: i32, %arg1: i32) -> (i32, i32) {
    %c0_i32 = arith.constant 0 : i32
    return %arg1, %arg0 : i32, i32
  }
  func.func @transform_1(%arg0: i32, %arg1: i32) -> (i32, i32) {
    %c0_i32 = arith.constant 0 : i32
    return %arg1, %arg0 : i32, i32
  }
  func.func @transform_2(%arg0: i32, %arg1: i32) -> (i32, i32) {
    %c0_i32 = arith.constant 0 : i32
    %c0_i32_0 = arith.constant 0 : i32
    return %c0_i32, %arg0 : i32, i32
  }
}

module attributes {stable_mosaic.version = 11 : i64} {
  func.func @_gcn_fused_kernel(%arg0: i32, %arg1: i32, %arg2: memref<256x256xi8, #tpu.memory_space<vmem>>, %arg3: memref<256x33xbf16, #tpu.memory_space<vmem>>, %arg4: memref<33x128xf32, #tpu.memory_space<vmem>>, %arg5: memref<1x128xf32, #tpu.memory_space<vmem>>, %arg6: memref<256x128xf32, #tpu.memory_space<vmem>>, %arg7: memref<256x33xf32, #tpu.memory_space<vmem>>) attributes {dimension_semantics = [#tpu.dimension_semantics<parallel>, #tpu.dimension_semantics<arbitrary>], iteration_bounds = array<i64: 1, 1>, scalar_prefetch = 0 : i64, scratch_operands = 1 : i64, tpu.core_type = #tpu.core_type<tc>, window_params = [{transform_indices = @transform_0, window_bounds = array<i64: 256, 256>}, {pipeline_mode = #tpu.pipeline_mode<synchronous>, transform_indices = @transform_1, window_bounds = array<i64: 256, 33>}, {pipeline_mode = #tpu.pipeline_mode<synchronous>, transform_indices = @transform_2, window_bounds = array<i64: 33, 128>}, {pipeline_mode = #tpu.pipeline_mode<synchronous>, transform_indices = @transform_3, window_bounds = array<i64: 1, 128>}, {transform_indices = @transform_4, window_bounds = array<i64: 256, 128>}]} {
    %c0_i32 = arith.constant 0 : i32
    %0 = arith.cmpi eq, %arg1, %c0_i32 : i32
    %1 = arith.extui %0 : i1 to i32
    %c0_i32_0 = arith.constant 0 : i32
    %2 = arith.cmpi ne, %1, %c0_i32_0 : i32
    scf.if %2 {
      %cst_9 = arith.constant 0.000000e+00 : f32
      %16 = vector.broadcast %cst_9 : f32 to vector<256x33xf32>
      %c0_10 = arith.constant 0 : index
      %c0_11 = arith.constant 0 : index
      %17 = vector.load %arg7[%c0_10, %c0_11] : memref<256x33xf32, #tpu.memory_space<vmem>>, vector<256x33xf32>
      tpu.vector_store %arg7[%c0_10, %c0_11], %16 {strides = array<i32>} : memref<256x33xf32, #tpu.memory_space<vmem>>, vector<256x33xf32>,
    } else {
    }
    %c0 = arith.constant 0 : index
    %c0_1 = arith.constant 0 : index
    %3 = vector.load %arg2[%c0, %c0_1] : memref<256x256xi8, #tpu.memory_space<vmem>>, vector<256x256xi8>
    %4 = arith.sitofp %3 : vector<256x256xi8> to vector<256x256xbf16>
    %c256_i32 = arith.constant 256 : i32
    %5 = arith.muli %arg1, %c256_i32 : i32
    %6 = tpu.assume_multiple %5, 256 : i32
    %7 = arith.index_cast %6 : i32 to index
    %c0_2 = arith.constant 0 : index
    %8 = vector.load %arg3[%7, %c0_2] : memref<256x33xbf16, #tpu.memory_space<vmem>>, vector<256x33xbf16>
    %c0_3 = arith.constant 0 : index
    %c0_4 = arith.constant 0 : index
    %9 = vector.load %arg7[%c0_3, %c0_4] : memref<256x33xf32, #tpu.memory_space<vmem>>, vector<256x33xf32>
    %cst = arith.constant dense<0.000000e+00> : vector<256x33xf32>
    %10 = tpu.matmul %4, %8, %cst {dimension_numbers = #tpu.dot_dimension_numbers<[1], [0], [0], [1], [0, 0, 1, 1], [], []>} : vector<256x256xbf16>, vector<256x33xbf16>, vector<256x33xf32> -> vector<256x33xf32>
    %11 = arith.addf %9, %10 : vector<256x33xf32>
    %c0_5 = arith.constant 0 : index
    %c0_6 = arith.constant 0 : index
    %12 = vector.load %arg7[%c0_5, %c0_6] : memref<256x33xf32, #tpu.memory_space<vmem>>, vector<256x33xf32>
    tpu.vector_store %arg7[%c0_5, %c0_6], %11 {strides = array<i32>} : memref<256x33xf32, #tpu.memory_space<vmem>>, vector<256x33xf32>,
    %c0_i32_7 = arith.constant 0 : i32
    %13 = arith.cmpi eq, %arg1, %c0_i32_7 : i32
    %14 = arith.extui %13 : i1 to i32
    %c0_i32_8 = arith.constant 0 : i32
    %15 = arith.cmpi ne, %14, %c0_i32_8 : i32
    scf.if %15 {
      %c0_9 = arith.constant 0 : index
      %c0_10 = arith.constant 0 : index
      %16 = vector.load %arg7[%c0_9, %c0_10] : memref<256x33xf32, #tpu.memory_space<vmem>>, vector<256x33xf32>
      %17 = vector.extract_strided_slice %16 {offsets = [0, 32], sizes = [256, 1], strides = [1, 1]} : vector<256x33xf32> to vector<256x1xf32>
      %cst_11 = arith.constant 1.000000e+00 : f32
      %18 = vector.broadcast %cst_11 : f32 to vector<256x1xf32>
      %19 = arith.maximumf %17, %18 : vector<256x1xf32>
      %20 = math.rsqrt %19 : vector<256x1xf32>
      %c0_12 = arith.constant 0 : index
      %c0_13 = arith.constant 0 : index
      %21 = vector.load %arg4[%c0_12, %c0_13] : memref<33x128xf32, #tpu.memory_space<vmem>>, vector<33x128xf32>
      %cst_14 = arith.constant dense<0.000000e+00> : vector<256x128xf32>
      %22 = tpu.matmul %16, %21, %cst_14 {dimension_numbers = #tpu.dot_dimension_numbers<[1], [0], [0], [1], [0, 0, 1, 1], [], []>} : vector<256x33xf32>, vector<33x128xf32>, vector<256x128xf32> -> vector<256x128xf32>
      %23 = vector.broadcast %20 : vector<256x1xf32> to vector<256x128xf32>
      %24 = arith.mulf %22, %23 : vector<256x128xf32>
      %c0_15 = arith.constant 0 : index
      %c0_16 = arith.constant 0 : index
      %25 = vector.load %arg5[%c0_15, %c0_16] : memref<1x128xf32, #tpu.memory_space<vmem>>, vector<1x128xf32>
      %26 = vector.broadcast %25 : vector<1x128xf32> to vector<256x128xf32>
      %27 = arith.addf %24, %26 : vector<256x128xf32>
      %cst_17 = arith.constant 0.000000e+00 : f32
      %28 = vector.broadcast %cst_17 : f32 to vector<256x128xf32>
      %29 = arith.maximumf %27, %28 : vector<256x128xf32>
      %c0_18 = arith.constant 0 : index
      %c0_19 = arith.constant 0 : index
      %30 = vector.load %arg6[%c0_18, %c0_19] : memref<256x128xf32, #tpu.memory_space<vmem>>, vector<256x128xf32>
      tpu.vector_store %arg6[%c0_18, %c0_19], %29 {strides = array<i32>} : memref<256x128xf32, #tpu.memory_space<vmem>>, vector<256x128xf32>,
    } else {
    }
    return
  }
  func.func @transform_0(%arg0: i32, %arg1: i32) -> (i32, i32) {
    %c0_i32 = arith.constant 0 : i32
    return %arg0, %arg1 : i32, i32
  }
  func.func @transform_1(%arg0: i32, %arg1: i32) -> (i32, i32) {
    %c0_i32 = arith.constant 0 : i32
    %c0_i32_0 = arith.constant 0 : i32
    %c0_i32_1 = arith.constant 0 : i32
    return %c0_i32, %c0_i32_0 : i32, i32
  }
  func.func @transform_2(%arg0: i32, %arg1: i32) -> (i32, i32) {
    %c0_i32 = arith.constant 0 : i32
    %c0_i32_0 = arith.constant 0 : i32
    %c0_i32_1 = arith.constant 0 : i32
    return %c0_i32, %c0_i32_0 : i32, i32
  }
  func.func @transform_3(%arg0: i32, %arg1: i32) -> (i32, i32) {
    %c0_i32 = arith.constant 0 : i32
    %c0_i32_0 = arith.constant 0 : i32
    %c0_i32_1 = arith.constant 0 : i32
    return %c0_i32, %c0_i32_0 : i32, i32
  }
  func.func @transform_4(%arg0: i32, %arg1: i32) -> (i32, i32) {
    %c0_i32 = arith.constant 0 : i32
    %c0_i32_0 = arith.constant 0 : i32
    return %arg0, %c0_i32 : i32, i32
  }
}

</mosaic_0001>

<llo_original>
// kernel: gcn_forward.2
$region0: #{gcn_forward.2}
  #allocation0 [shape = 'u32[]', space=smem, size = 0x4, offset = 0x4, fixed_abs, tag = 'smem constant byte address 0x4 - core index']
  #allocation1 [shape = 'u32[144,128]{1,0:T(1,128)}', space=vmem, size = 0x12000, scoped, tag = 'internal scratch']
  %s0 = inlined_call_operand.hbm [shape: f32[256,256], index: 0, kind: input, shape index: {}]
  %s1 = inlined_call_operand.vmem [shape: s8[256,256], index: 1, kind: output, shape index: {0}]
  %s2 = inlined_call_operand.vmem [shape: f32[1,256], index: 2, kind: output, shape index: {1}]
  %3 = xla_tuple %s1, %s2
  %s4 = sld [smem:[#allocation0]]
  $region30: #{gcn_forward.2} parent=0
    _
  %s6 = ssub.s32 1, %s4
  %s7 = scalar_select 0, %s6, %s4
  $region1: #{gcn_forward.2} parent=0
    #allocation2 [shape = 'u8[262144]{0}', space=vmem, size = 0x40000, scoped, tag = 'input window, operand 0, single buffered']
    #allocation3 [shape = 's32[1]{0}', space=sflag, size = 0x4, scoped, tag = 'scoped memory for gcn_forward.2']
    %8 = vsyncpa [#allocation3], 0
    // Predicated region
    $region2: #{gcn_forward.2} parent=1 // pred_check
      _
    $region3: #{gcn_forward.2} parent=1 // pred_check_branch
      %10 = sbr.rel (0) target = $region5
    $region4: #{gcn_forward.2} parent=1 // pred_region
      %s12 = ssub.s32 8192, 8192
      %13 = vsyncadd [#allocation3], %s12
      %s14 = sshll.u32 [#allocation2], 4
      %s15 = int_to_ptr.vmem [resolvable:$true] %s14
      %20 = dma.hbm_to_vmem [thread:$0]  %s0, 8192, %s15, [#allocation3], 256, 256, 16
    $region5: #{gcn_forward.2} parent=1 // pred_fallthru
      _
    // Predicated region
    $region6: #{gcn_forward.2} parent=1 // pred_check
      _
    $region7: #{gcn_forward.2} parent=1 // pred_check_branch
      %22 = sbr.rel (0) target = $region9
    $region8: #{gcn_forward.2} parent=1 // pred_region
      %23 = dma.done [#allocation3], 8192
    $region9: #{gcn_forward.2} parent=1 // pred_fallthru
      _
    %p24 = scmp.eq.s32.totalorder 0, 0
    // Predicated region
    $region10: #{gcn_forward.2} parent=1 // pred_check
      %p25 = pneg %p24
    $region11: #{gcn_forward.2} parent=1 // pred_check_branch
      %27 = sbr.rel (%p25) target = $region13
    $region12: #{gcn_forward.2} parent=1 // pred_region
      %v28 = vlaneseq
      %vm29 = vcmp.ge.s32.totalorder %v28, 0
      %vm30 = vcmp.lt.s32.totalorder %v28, 256
      %vm31 = vmand %vm29, %vm30
      %32 = vst.msk [vmem:[%s2] sm:$0x3] %vm31, 0.0
    $region13: #{gcn_forward.2} parent=1 // pred_fallthru
      _
    %v33 = vld [vmem:[#allocation2] sm:$0xff]
    %v34 = vld [vmem:[#allocation2 + $0x8] sm:$0xff]
    %v35 = vld [vmem:[#allocation2 + $0x10] sm:$0xff]
    %v36 = vld [vmem:[#allocation2 + $0x18] sm:$0xff]
    %v37 = vld [vmem:[#allocation2 + $0x20] sm:$0xff]
    %v38 = vld [vmem:[#allocation2 + $0x28] sm:$0xff]
    %v39 = vld [vmem:[#allocation2 + $0x30] sm:$0xff]
    %v40 = vld [vmem:[#allocation2 + $0x38] sm:$0xff]
    %v41 = vld [vmem:[#allocation2 + $0x40] sm:$0xff]
    %v42 = vld [vmem:[#allocation2 + $0x48] sm:$0xff]
    %v43 = vld [vmem:[#allocation2 + $0x50] sm:$0xff]
    %v44 = vld [vmem:[#allocation2 + $0x58] sm:$0xff]
    %v45 = vld [vmem:[#allocation2 + $0x60] sm:$0xff]
    %v46 = vld [vmem:[#allocation2 + $0x68] sm:$0xff]
    %v47 = vld [vmem:[#allocation2 + $0x70] sm:$0xff]
    %v48 = vld [vmem:[#allocation2 + $0x78] sm:$0xff]
    %v49 = vld [vmem:[#allocation2 + $0x80] sm:$0xff]
    %v50 = vld [vmem:[#allocation2 + $0x88] sm:$0xff]
    %v51 = vld [vmem:[#allocation2 + $0x90] sm:$0xff]
    %v52 = vld [vmem:[#allocation2 + $0x98] sm:$0xff]
    %v53 = vld [vmem:[#allocation2 + $0xa0] sm:$0xff]
    %v54 = vld [vmem:[#allocation2 + $0xa8] sm:$0xff]
    %v55 = vld [vmem:[#allocation2 + $0xb0] sm:$0xff]
    %v56 = vld [vmem:[#allocation2 + $0xb8] sm:$0xff]
    %v57 = vld [vmem:[#allocation2 + $0xc0] sm:$0xff]
    %v58 = vld [vmem:[#allocation2 + $0xc8] sm:$0xff]
    %v59 = vld [vmem:[#allocation2 + $0xd0] sm:$0xff]
    %v60 = vld [vmem:[#allocation2 + $0xd8] sm:$0xff]
    %v61 = vld [vmem:[#allocation2 + $0xe0] sm:$0xff]
    %v62 = vld [vmem:[#allocation2 + $0xe8] sm:$0xff]
    %v63 = vld [vmem:[#allocation2 + $0xf0] sm:$0xff]
    %v64 = vld [vmem:[#allocation2 + $0xf8] sm:$0xff]
    %v65 = vld [vmem:[#allocation2 + $0x100] sm:$0xff]
    %v66 = vld [vmem:[#allocation2 + $0x108] sm:$0xff]
    %v67 = vld [vmem:[#allocation2 + $0x110] sm:$0xff]
    %v68 = vld [vmem:[#allocation2 + $0x118] sm:$0xff]
    %v69 = vld [vmem:[#allocation2 + $0x120] sm:$0xff]
    %v70 = vld [vmem:[#allocation2 + $0x128] sm:$0xff]
    %v71 = vld [vmem:[#allocation2 + $0x130] sm:$0xff]
    %v72 = vld [vmem:[#allocation2 + $0x138] sm:$0xff]
    %v73 = vld [vmem:[#allocation2 + $0x140] sm:$0xff]
    %v74 = vld [vmem:[#allocation2 + $0x148] sm:$0xff]
    %v75 = vld [vmem:[#allocation2 + $0x150] sm:$0xff]
    %v76 = vld [vmem:[#allocation2 + $0x158] sm:$0xff]
    %v77 = vld [vmem:[#allocation2 + $0x160] sm:$0xff]
    %v78 = vld [vmem:[#allocation2 + $0x168] sm:$0xff]
    %v79 = vld [vmem:[#allocation2 + $0x170] sm:$0xff]
    %v80 = vld [vmem:[#allocation2 + $0x178] sm:$0xff]
    %v81 = vld [vmem:[#allocation2 + $0x180] sm:$0xff]
    %v82 = vld [vmem:[#allocation2 + $0x188] sm:$0xff]
    %v83 = vld [vmem:[#allocation2 + $0x190] sm:$0xff]
    %v84 = vld [vmem:[#allocation2 + $0x198] sm:$0xff]
    %v85 = vld [vmem:[#allocation2 + $0x1a0] sm:$0xff]
    %v86 = vld [vmem:[#allocation2 + $0x1a8] sm:$0xff]
    %v87 = vld [vmem:[#allocation2 + $0x1b0] sm:$0xff]
    %v88 = vld [vmem:[#allocation2 + $0x1b8] sm:$0xff]
    %v89 = vld [vmem:[#allocation2 + $0x1c0] sm:$0xff]
    %v90 = vld [vmem:[#allocation2 + $0x1c8] sm:$0xff]
    %v91 = vld [vmem:[#allocation2 + $0x1d0] sm:$0xff]
    %v92 = vld [vmem:[#allocation2 + $0x1d8] sm:$0xff]
    %v93 = vld [vmem:[#allocation2 + $0x1e0] sm:$0xff]
    %v94 = vld [vmem:[#allocation2 + $0x1e8] sm:$0xff]
    %v95 = vld [vmem:[#allocation2 + $0x1f0] sm:$0xff]
    %v96 = vld [vmem:[#allocation2 + $0x1f8] sm:$0xff]
    %v97 = vtrunc.f32 %v33
    %v98 = vtrunc.f32 %v34
    %v99 = vtrunc.f32 %v35
    %v100 = vtrunc.f32 %v36
    %v101 = vtrunc.f32 %v37
    %v102 = vtrunc.f32 %v38
    %v103 = vtrunc.f32 %v39
    %v104 = vtrunc.f32 %v40
    %v105 = vtrunc.f32 %v41
    %v106 = vtrunc.f32 %v42
    %v107 = vtrunc.f32 %v43
    %v108 = vtrunc.f32 %v44
    %v109 = vtrunc.f32 %v45
    %v110 = vtrunc.f32 %v46
    %v111 = vtrunc.f32 %v47
    %v112 = vtrunc.f32 %v48
    %v113 = vtrunc.f32 %v49
    %v114 = vtrunc.f32 %v50
    %v115 = vtrunc.f32 %v51
    %v116 = vtrunc.f32 %v52
    %v117 = vtrunc.f32 %v53
    %v118 = vtrunc.f32 %v54
    %v119 = vtrunc.f32 %v55
    %v120 = vtrunc.f32 %v56
    %v121 = vtrunc.f32 %v57
    %v122 = vtrunc.f32 %v58
    %v123 = vtrunc.f32 %v59
    %v124 = vtrunc.f32 %v60
    %v125 = vtrunc.f32 %v61
    %v126 = vtrunc.f32 %v62
    %v127 = vtrunc.f32 %v63
    %v128 = vtrunc.f32 %v64
    %v129 = vtrunc.f32 %v65
    %v130 = vtrunc.f32 %v66
    %v131 = vtrunc.f32 %v67
    %v132 = vtrunc.f32 %v68
    %v133 = vtrunc.f32 %v69
    %v134 = vtrunc.f32 %v70
    %v135 = vtrunc.f32 %v71
    %v136 = vtrunc.f32 %v72
    %v137 = vtrunc.f32 %v73
    %v138 = vtrunc.f32 %v74
    %v139 = vtrunc.f32 %v75
    %v140 = vtrunc.f32 %v76
    %v141 = vtrunc.f32 %v77
    %v142 = vtrunc.f32 %v78
    %v143 = vtrunc.f32 %v79
    %v144 = vtrunc.f32 %v80
    %v145 = vtrunc.f32 %v81
    %v146 = vtrunc.f32 %v82
    %v147 = vtrunc.f32 %v83
    %v148 = vtrunc.f32 %v84
    %v149 = vtrunc.f32 %v85
    %v150 = vtrunc.f32 %v86
    %v151 = vtrunc.f32 %v87
    %v152 = vtrunc.f32 %v88
    %v153 = vtrunc.f32 %v89
    %v154 = vtrunc.f32 %v90
    %v155 = vtrunc.f32 %v91
    %v156 = vtrunc.f32 %v92
    %v157 = vtrunc.f32 %v93
    %v158 = vtrunc.f32 %v94
    %v159 = vtrunc.f32 %v95
    %v160 = vtrunc.f32 %v96
    %v161 = vpack.c.f32.eXmY %v97, %v99, 312
    %v165 = vpack.c.f32.eXmY %v101, %v103, 312
    %v169 = vpack.c.b8 %v165, %v161
    %v171 = vpack.c.f32.eXmY %v98, %v100, 312
    %v175 = vpack.c.f32.eXmY %v102, %v104, 312
    %v179 = vpack.c.b8 %v175, %v171
    %v181 = vpack.c.f32.eXmY %v105, %v107, 312
    %v185 = vpack.c.f32.eXmY %v109, %v111, 312
    %v189 = vpack.c.b8 %v185, %v181
    %v191 = vpack.c.f32.eXmY %v106, %v108, 312
    %v195 = vpack.c.f32.eXmY %v110, %v112, 312
    %v199 = vpack.c.b8 %v195, %v191
    %v201 = vpack.c.f32.eXmY %v113, %v115, 312
    %v205 = vpack.c.f32.eXmY %v117, %v119, 312
    %v209 = vpack.c.b8 %v205, %v201
    %v211 = vpack.c.f32.eXmY %v114, %v116, 312
    %v215 = vpack.c.f32.eXmY %v118, %v120, 312
    %v219 = vpack.c.b8 %v215, %v211
    %v221 = vpack.c.f32.eXmY %v121, %v123, 312
    %v225 = vpack.c.f32.eXmY %v125, %v127, 312
    %v229 = vpack.c.b8 %v225, %v221
    %v231 = vpack.c.f32.eXmY %v122, %v124, 312
    %v235 = vpack.c.f32.eXmY %v126, %v128, 312
    %v239 = vpack.c.b8 %v235, %v231
    %v241 = vpack.c.f32.eXmY %v129, %v131, 312
    %v245 = vpack.c.f32.eXmY %v133, %v135, 312
    %v249 = vpack.c.b8 %v245, %v241
    %v251 = vpack.c.f32.eXmY %v130, %v132, 312
    %v255 = vpack.c.f32.eXmY %v134, %v136, 312
    %v259 = vpack.c.b8 %v255, %v251
    %v261 = vpack.c.f32.eXmY %v137, %v139, 312
    %v265 = vpack.c.f32.eXmY %v141, %v143, 312
    %v269 = vpack.c.b8 %v265, %v261
    %v271 = vpack.c.f32.eXmY %v138, %v140, 312
    %v275 = vpack.c.f32.eXmY %v142, %v144, 312
    %v279 = vpack.c.b8 %v275, %v271
    %v281 = vpack.c.f32.eXmY %v145, %v147, 312
    %v285 = vpack.c.f32.eXmY %v149, %v151, 312
    %v289 = vpack.c.b8 %v285, %v281
    %v291 = vpack.c.f32.eXmY %v146, %v148, 312
    %v295 = vpack.c.f32.eXmY %v150, %v152, 312
    %v299 = vpack.c.b8 %v295, %v291
    %v301 = vpack.c.f32.eXmY %v153, %v155, 312
    %v305 = vpack.c.f32.eXmY %v157, %v159, 312
    %v309 = vpack.c.b8 %v305, %v301
    %v311 = vpack.c.f32.eXmY %v154, %v156, 312
    %v315 = vpack.c.f32.eXmY %v158, %v160, 312
    %v319 = vpack.c.b8 %v315, %v311
    %321 = vst [vmem:[%s1] sm:$0xff] %v169
    %322 = vst [vmem:[%s1 + $0x8] sm:$0xff] %v179
    %323 = vst [vmem:[%s1 + $0x10] sm:$0xff] %v189
    %324 = vst [vmem:[%s1 + $0x18] sm:$0xff] %v199
    %325 = vst [vmem:[%s1 + $0x20] sm:$0xff] %v209
    %326 = vst [vmem:[%s1 + $0x28] sm:$0xff] %v219
    %327 = vst [vmem:[%s1 + $0x30] sm:$0xff] %v229
    %328 = vst [vmem:[%s1 + $0x38] sm:$0xff] %v239
    %329 = vst [vmem:[%s1 + $0x40] sm:$0xff] %v249
    %330 = vst [vmem:[%s1 + $0x48] sm:$0xff] %v259
    %331 = vst [vmem:[%s1 + $0x50] sm:$0xff] %v269
    %332 = vst [vmem:[%s1 + $0x58] sm:$0xff] %v279
    %333 = vst [vmem:[%s1 + $0x60] sm:$0xff] %v289
    %334 = vst [vmem:[%s1 + $0x68] sm:$0xff] %v299
    %335 = vst [vmem:[%s1 + $0x70] sm:$0xff] %v309
    %336 = vst [vmem:[%s1 + $0x78] sm:$0xff] %v319
    %v337 = vld [vmem:[%s2] sm:$0x3]
    %v338 = vadd.f32 %v33, %v35
    %v339 = vadd.f32 %v338, %v37
    %v340 = vadd.f32 %v339, %v39
    %v341 = vadd.f32 %v340, %v41
    %v342 = vadd.f32 %v341, %v43
    %v343 = vadd.f32 %v342, %v45
    %v344 = vadd.f32 %v343, %v47
    %v345 = vadd.f32 %v344, %v49
    %v346 = vadd.f32 %v345, %v51
    %v347 = vadd.f32 %v346, %v53
    %v348 = vadd.f32 %v347, %v55
    %v349 = vadd.f32 %v348, %v57
    %v350 = vadd.f32 %v349, %v59
    %v351 = vadd.f32 %v350, %v61
    %v352 = vadd.f32 %v351, %v63
    %v353 = vadd.f32 %v352, %v65
    %v354 = vadd.f32 %v353, %v67
    %v355 = vadd.f32 %v354, %v69
    %v356 = vadd.f32 %v355, %v71
    %v357 = vadd.f32 %v356, %v73
    %v358 = vadd.f32 %v357, %v75
    %v359 = vadd.f32 %v358, %v77
    %v360 = vadd.f32 %v359, %v79
    %v361 = vadd.f32 %v360, %v81
    %v362 = vadd.f32 %v361, %v83
    %v363 = vadd.f32 %v362, %v85
    %v364 = vadd.f32 %v363, %v87
    %v365 = vadd.f32 %v364, %v89
    %v366 = vadd.f32 %v365, %v91
    %v367 = vadd.f32 %v366, %v93
    %v368 = vadd.f32 %v367, %v95
    %v369 = vrot.slane %v368, 4
    %v370 = vadd.f32 %v368, %v369
    %v371 = vrot.slane %v370, 2
    %v372 = vadd.f32 %v370, %v371
    %v373 = vrot.slane %v372, 1
    %v374 = vadd.f32 %v372, %v373
    %v375 = vadd.f32 %v34, %v36
    %v376 = vadd.f32 %v375, %v38
    %v377 = vadd.f32 %v376, %v40
    %v378 = vadd.f32 %v377, %v42
    %v379 = vadd.f32 %v378, %v44
    %v380 = vadd.f32 %v379, %v46
    %v381 = vadd.f32 %v380, %v48
    %v382 = vadd.f32 %v381, %v50
    %v383 = vadd.f32 %v382, %v52
    %v384 = vadd.f32 %v383, %v54
    %v385 = vadd.f32 %v384, %v56
    %v386 = vadd.f32 %v385, %v58
    %v387 = vadd.f32 %v386, %v60
    %v388 = vadd.f32 %v387, %v62
    %v389 = vadd.f32 %v388, %v64
    %v390 = vadd.f32 %v389, %v66
    %v391 = vadd.f32 %v390, %v68
    %v392 = vadd.f32 %v391, %v70
    %v393 = vadd.f32 %v392, %v72
    %v394 = vadd.f32 %v393, %v74
    %v395 = vadd.f32 %v394, %v76
    %v396 = vadd.f32 %v395, %v78
    %v397 = vadd.f32 %v396, %v80
    %v398 = vadd.f32 %v397, %v82
    %v399 = vadd.f32 %v398, %v84
    %v400 = vadd.f32 %v399, %v86
    %v401 = vadd.f32 %v400, %v88
    %v402 = vadd.f32 %v401, %v90
    %v403 = vadd.f32 %v402, %v92
    %v404 = vadd.f32 %v403, %v94
    %v405 = vadd.f32 %v404, %v96
    %v406 = vrot.slane %v405, 4
    %v407 = vadd.f32 %v405, %v406
    %v408 = vrot.slane %v407, 2
    %v409 = vadd.f32 %v407, %v408
    %v410 = vrot.slane %v409, 1
    %v411 = vadd.f32 %v409, %v410
    %v414 = vcombine.low %v374, %v411
    %v416 = vunpack.c.l.s4 1966171168
    %v417 = vunpack.c.0.s8 %v416
    %v418 = vlaneseq
    %v419 = vshrl.u32 %v418, 7
    %v420 = vsub.s32 %v417, %v419
    %v421 = vrot.slane %v414, %v420
    %v423 = vunpack.c.l.s4 1966171168
    %v424 = vunpack.c.0.s8 %v423
    %v425 = vlaneseq
    %v426 = vshrl.u32 %v425, 7
    %v427 = vsub.s32 %v424, %v426
    %v428 = vrot.slane %v421, %v427
    %v430 = vadd.f32 %v337, %v428
    %v431 = vlaneseq
    %vm432 = vcmp.ge.s32.totalorder %v431, 0
    %vm433 = vcmp.lt.s32.totalorder %v431, 256
    %vm434 = vmand %vm432, %vm433
    %435 = vst.msk [vmem:[%s2] sm:$0x3] %vm434, %v430
    // Predicated region
    $region14: #{gcn_forward.2} parent=1 // pred_check
      _
    $region15: #{gcn_forward.2} parent=1 // pred_check_branch
      %437 = sbr.rel (0) target = $region17
    $region16: #{gcn_forward.2} parent=1 // pred_region
      _
    $region17: #{gcn_forward.2} parent=1 // pred_fallthru
      _
    // Predicated region
    $region18: #{gcn_forward.2} parent=1 // pred_check
      _
    $region19: #{gcn_forward.2} parent=1 // pred_check_branch
      %439 = sbr.rel (0) target = $region21
    $region20: #{gcn_forward.2} parent=1 // pred_region
      _
    $region21: #{gcn_forward.2} parent=1 // pred_fallthru
      _
    // Predicated region
    $region22: #{gcn_forward.2} parent=1 // pred_check
      _
    $region23: #{gcn_forward.2} parent=1 // pred_check_branch
      %441 = sbr.rel (0) target = $region25
    $region24: #{gcn_forward.2} parent=1 // pred_region
      _
    $region25: #{gcn_forward.2} parent=1 // pred_fallthru
      _
    // Predicated region
    $region26: #{gcn_forward.2} parent=1 // pred_check
      _
    $region27: #{gcn_forward.2} parent=1 // pred_check_branch
      %443 = sbr.rel (0) target = $region29
    $region28: #{gcn_forward.2} parent=1 // pred_region
      _
    $region29: #{gcn_forward.2} parent=1 // pred_fallthru
      _
    %444 = vsyncpa [#allocation3], 1

// kernel: gcn_forward.3
$region0: #{gcn_forward.3}
  #allocation0 [shape = 'u32[]', space=smem, size = 0x4, offset = 0x4, fixed_abs, tag = 'smem constant byte address 0x4 - core index']
  #allocation1 [shape = 'u32[144,128]{1,0:T(1,128)}', space=vmem, size = 0x12000, scoped, tag = 'internal scratch']
  #allocation2 [shape = 'f32[256,33]{1,0:T(8,128)}', space=vmem, size = 0x20000, scoped, tag = 'scratch operand']
  %s0 = inlined_call_operand.vmem [shape: s8[256,256], index: 0, kind: input, shape index: {}]
  %s1 = inlined_call_operand.vmem [shape: bf16[256,33], index: 1, kind: input, shape index: {}]
  %s2 = inlined_call_operand.vmem [shape: f32[33,128], index: 2, kind: input, shape index: {}]
  %s3 = inlined_call_operand.vmem [shape: f32[1,128], index: 3, kind: input, shape index: {}]
  %s4 = inlined_call_operand.vmem [shape: f32[256,128], index: 4, kind: output, shape index: {}]
  %s5 = sld [smem:[#allocation0]]
  $region34: #{gcn_forward.3} parent=0
    _
  %s7 = ssub.s32 1, %s5
  %s8 = scalar_select 0, %s7, %s5
  // Predicated region
  $region2: #{gcn_forward.3} parent=0 // pred_check
    _
  $region3: #{gcn_forward.3} parent=0 // pred_check_branch
    %10 = sbr.rel (0) target = $region5
  $region4: #{gcn_forward.3} parent=0 // pred_region
    _
  $region5: #{gcn_forward.3} parent=0 // pred_fallthru
    _
  // Predicated region
  $region6: #{gcn_forward.3} parent=0 // pred_check
    _
  $region7: #{gcn_forward.3} parent=0 // pred_check_branch
    %12 = sbr.rel (0) target = $region9
  $region8: #{gcn_forward.3} parent=0 // pred_region
    _
  $region9: #{gcn_forward.3} parent=0 // pred_fallthru
    _
  // Predicated region
  $region10: #{gcn_forward.3} parent=0 // pred_check
    _
  $region11: #{gcn_forward.3} parent=0 // pred_check_branch
    %14 = sbr.rel (0) target = $region13
  $region12: #{gcn_forward.3} parent=0 // pred_region
    _
  $region13: #{gcn_forward.3} parent=0 // pred_fallthru
    _
  // Predicated region
  $region14: #{gcn_forward.3} parent=0 // pred_check
    _
  $region15: #{gcn_forward.3} parent=0 // pred_check_branch
    %16 = sbr.rel (0) target = $region17
  $region16: #{gcn_forward.3} parent=0 // pred_region
    _
  $region17: #{gcn_forward.3} parent=0 // pred_fallthru
    _
  %p18 = scmp.eq.s32.totalorder 0, 0
  // Predicated region
  $region18: #{gcn_forward.3} parent=0 // pred_check
    %p19 = pneg %p18
  $region19: #{gcn_forward.3} parent=0 // pred_check_branch
    %21 = sbr.rel (%p19) target = $region21
  $region20: #{gcn_forward.3} parent=0 // pred_region
    %vm22 = vcmask 269312
    %23 = vst.msk [vmem:[#allocation2] sm:$0xff] %vm22, 0.0
    %24 = vst.msk [vmem:[#allocation2 + $0x8] sm:$0xff] %vm22, 0.0
    %25 = vst.msk [vmem:[#allocation2 + $0x10] sm:$0xff] %vm22, 0.0
    %26 = vst.msk [vmem:[#allocation2 + $0x18] sm:$0xff] %vm22, 0.0
    %27 = vst.msk [vmem:[#allocation2 + $0x20] sm:$0xff] %vm22, 0.0
    %28 = vst.msk [vmem:[#allocation2 + $0x28] sm:$0xff] %vm22, 0.0
    %29 = vst.msk [vmem:[#allocation2 + $0x30] sm:$0xff] %vm22, 0.0
    %30 = vst.msk [vmem:[#allocation2 + $0x38] sm:$0xff] %vm22, 0.0
    %31 = vst.msk [vmem:[#allocation2 + $0x40] sm:$0xff] %vm22, 0.0
    %32 = vst.msk [vmem:[#allocation2 + $0x48] sm:$0xff] %vm22, 0.0
    %33 = vst.msk [vmem:[#allocation2 + $0x50] sm:$0xff] %vm22, 0.0
    %34 = vst.msk [vmem:[#allocation2 + $0x58] sm:$0xff] %vm22, 0.0
    %35 = vst.msk [vmem:[#allocation2 + $0x60] sm:$0xff] %vm22, 0.0
    %36 = vst.msk [vmem:[#allocation2 + $0x68] sm:$0xff] %vm22, 0.0
    %37 = vst.msk [vmem:[#allocation2 + $0x70] sm:$0xff] %vm22, 0.0
    %38 = vst.msk [vmem:[#allocation2 + $0x78] sm:$0xff] %vm22, 0.0
    %39 = vst.msk [vmem:[#allocation2 + $0x80] sm:$0xff] %vm22, 0.0
    %40 = vst.msk [vmem:[#allocation2 + $0x88] sm:$0xff] %vm22, 0.0
    %41 = vst.msk [vmem:[#allocation2 + $0x90] sm:$0xff] %vm22, 0.0
    %42 = vst.msk [vmem:[#allocation2 + $0x98] sm:$0xff] %vm22, 0.0
    %43 = vst.msk [vmem:[#allocation2 + $0xa0] sm:$0xff] %vm22, 0.0
    %44 = vst.msk [vmem:[#allocation2 + $0xa8] sm:$0xff] %vm22, 0.0
    %45 = vst.msk [vmem:[#allocation2 + $0xb0] sm:$0xff] %vm22, 0.0
    %46 = vst.msk [vmem:[#allocation2 + $0xb8] sm:$0xff] %vm22, 0.0
    %47 = vst.msk [vmem:[#allocation2 + $0xc0] sm:$0xff] %vm22, 0.0
    %48 = vst.msk [vmem:[#allocation2 + $0xc8] sm:$0xff] %vm22, 0.0
    %49 = vst.msk [vmem:[#allocation2 + $0xd0] sm:$0xff] %vm22, 0.0
    %50 = vst.msk [vmem:[#allocation2 + $0xd8] sm:$0xff] %vm22, 0.0
    %51 = vst.msk [vmem:[#allocation2 + $0xe0] sm:$0xff] %vm22, 0.0
    %52 = vst.msk [vmem:[#allocation2 + $0xe8] sm:$0xff] %vm22, 0.0
    %53 = vst.msk [vmem:[#allocation2 + $0xf0] sm:$0xff] %vm22, 0.0
    %54 = vst.msk [vmem:[#allocation2 + $0xf8] sm:$0xff] %vm22, 0.0
  $region21: #{gcn_forward.3} parent=0 // pred_fallthru
    _
  %v55 = vld [vmem:[%s0] sm:$0xff]
  %v56 = vld [vmem:[%s0 + $0x8] sm:$0xff]
  %v57 = vld [vmem:[%s0 + $0x10] sm:$0xff]
  %v58 = vld [vmem:[%s0 + $0x18] sm:$0xff]
  %v59 = vld [vmem:[%s0 + $0x20] sm:$0xff]
  %v60 = vld [vmem:[%s0 + $0x28] sm:$0xff]
  %v61 = vld [vmem:[%s0 + $0x30] sm:$0xff]
  %v62 = vld [vmem:[%s0 + $0x38] sm:$0xff]
  %v63 = vld [vmem:[%s0 + $0x40] sm:$0xff]
  %v64 = vld [vmem:[%s0 + $0x48] sm:$0xff]
  %v65 = vld [vmem:[%s0 + $0x50] sm:$0xff]
  %v66 = vld [vmem:[%s0 + $0x58] sm:$0xff]
  %v67 = vld [vmem:[%s0 + $0x60] sm:$0xff]
  %v68 = vld [vmem:[%s0 + $0x68] sm:$0xff]
  %v69 = vld [vmem:[%s0 + $0x70] sm:$0xff]
  %v70 = vld [vmem:[%s0 + $0x78] sm:$0xff]
  %v71 = vunpack.c.l.s8.bf16 %v55
  %v72 = vunpack.c.l.s8.bf16 %v56
  %v73 = vunpack.c.h.s8.bf16 %v55
  %v74 = vunpack.c.h.s8.bf16 %v56
  %v75 = vunpack.c.l.s8.bf16 %v57
  %v76 = vunpack.c.l.s8.bf16 %v58
  %v77 = vunpack.c.h.s8.bf16 %v57
  %v78 = vunpack.c.h.s8.bf16 %v58
  %v79 = vunpack.c.l.s8.bf16 %v59
  %v80 = vunpack.c.l.s8.bf16 %v60
  %v81 = vunpack.c.h.s8.bf16 %v59
  %v82 = vunpack.c.h.s8.bf16 %v60
  %v83 = vunpack.c.l.s8.bf16 %v61
  %v84 = vunpack.c.l.s8.bf16 %v62
  %v85 = vunpack.c.h.s8.bf16 %v61
  %v86 = vunpack.c.h.s8.bf16 %v62
  %v87 = vunpack.c.l.s8.bf16 %v63
  %v88 = vunpack.c.l.s8.bf16 %v64
  %v89 = vunpack.c.h.s8.bf16 %v63
  %v90 = vunpack.c.h.s8.bf16 %v64
  %v91 = vunpack.c.l.s8.bf16 %v65
  %v92 = vunpack.c.l.s8.bf16 %v66
  %v93 = vunpack.c.h.s8.bf16 %v65
  %v94 = vunpack.c.h.s8.bf16 %v66
  %v95 = vunpack.c.l.s8.bf16 %v67
  %v96 = vunpack.c.l.s8.bf16 %v68
  %v97 = vunpack.c.h.s8.bf16 %v67
  %v98 = vunpack.c.h.s8.bf16 %v68
  %v99 = vunpack.c.l.s8.bf16 %v69
  %v100 = vunpack.c.l.s8.bf16 %v70
  %v101 = vunpack.c.h.s8.bf16 %v69
  %v102 = vunpack.c.h.s8.bf16 %v70
  %s103 = smul.u32 0, 256
  %s104 = sshra.s32 %s103, 3
  %s105 = sand.u32 %s103, 7
  %s106 = smul.addr %s104, 4
  %s107 = scalar_lea.vmem %s1, %s106
  %v108 = vld [vmem:[%s107] sm:$0xf]
  %v109 = vld [vmem:[%s107 + $0x4] sm:$0xf]
  %v110 = vld [vmem:[%s107 + $0x8] sm:$0xf]
  %v111 = vld [vmem:[%s107 + $0xc] sm:$0xf]
  %v112 = vld [vmem:[%s107 + $0x10] sm:$0xf]
  %v113 = vld [vmem:[%s107 + $0x14] sm:$0xf]
  %v114 = vld [vmem:[%s107 + $0x18] sm:$0xf]
  %v115 = vld [vmem:[%s107 + $0x1c] sm:$0xf]
  %v116 = vld [vmem:[%s107 + $0x20] sm:$0xf]
  %v117 = vld [vmem:[%s107 + $0x24] sm:$0xf]
  %v118 = vld [vmem:[%s107 + $0x28] sm:$0xf]
  %v119 = vld [vmem:[%s107 + $0x2c] sm:$0xf]
  %v120 = vld [vmem:[%s107 + $0x30] sm:$0xf]
  %v121 = vld [vmem:[%s107 + $0x34] sm:$0xf]
  %v122 = vld [vmem:[%s107 + $0x38] sm:$0xf]
  %v123 = vld [vmem:[%s107 + $0x3c] sm:$0xf]
  %v124 = vld [vmem:[%s107 + $0x40] sm:$0xf]
  %v125 = vld [vmem:[%s107 + $0x44] sm:$0xf]
  %v126 = vld [vmem:[%s107 + $0x48] sm:$0xf]
  %v127 = vld [vmem:[%s107 + $0x4c] sm:$0xf]
  %v128 = vld [vmem:[%s107 + $0x50] sm:$0xf]
  %v129 = vld [vmem:[%s107 + $0x54] sm:$0xf]
  %v130 = vld [vmem:[%s107 + $0x58] sm:$0xf]
  %v131 = vld [vmem:[%s107 + $0x5c] sm:$0xf]
  %v132 = vld [vmem:[%s107 + $0x60] sm:$0xf]
  %v133 = vld [vmem:[%s107 + $0x64] sm:$0xf]
  %v134 = vld [vmem:[%s107 + $0x68] sm:$0xf]
  %v135 = vld [vmem:[%s107 + $0x6c] sm:$0xf]
  %v136 = vld [vmem:[%s107 + $0x70] sm:$0xf]
  %v137 = vld [vmem:[%s107 + $0x74] sm:$0xf]
  %v138 = vld [vmem:[%s107 + $0x78] sm:$0xf]
  %v139 = vld [vmem:[%s107 + $0x7c] sm:$0xf]
  %v140 = vld [vmem:[#allocation2] sm:$0xff]
  %v141 = vld [vmem:[#allocation2 + $0x8] sm:$0xff]
  %v142 = vld [vmem:[#allocation2 + $0x10] sm:$0xff]
  %v143 = vld [vmem:[#allocation2 + $0x18] sm:$0xff]
  %v144 = vld [vmem:[#allocation2 + $0x20] sm:$0xff]
  %v145 = vld [vmem:[#allocation2 + $0x28] sm:$0xff]
  %v146 = vld [vmem:[#allocation2 + $0x30] sm:$0xff]
  %v147 = vld [vmem:[#allocation2 + $0x38] sm:$0xff]
  %v148 = vld [vmem:[#allocation2 + $0x40] sm:$0xff]
  %v149 = vld [vmem:[#allocation2 + $0x48] sm:$0xff]
  %v150 = vld [vmem:[#allocation2 + $0x50] sm:$0xff]
  %v151 = vld [vmem:[#allocation2 + $0x58] sm:$0xff]
  %v152 = vld [vmem:[#allocation2 + $0x60] sm:$0xff]
  %v153 = vld [vmem:[#allocation2 + $0x68] sm:$0xff]
  %v154 = vld [vmem:[#allocation2 + $0x70] sm:$0xff]
  %v155 = vld [vmem:[#allocation2 + $0x78] sm:$0xff]
  %v156 = vld [vmem:[#allocation2 + $0x80] sm:$0xff]
  %v157 = vld [vmem:[#allocation2 + $0x88] sm:$0xff]
  %v158 = vld [vmem:[#allocation2 + $0x90] sm:$0xff]
  %v159 = vld [vmem:[#allocation2 + $0x98] sm:$0xff]
  %v160 = vld [vmem:[#allocation2 + $0xa0] sm:$0xff]
  %v161 = vld [vmem:[#allocation2 + $0xa8] sm:$0xff]
  %v162 = vld [vmem:[#allocation2 + $0xb0] sm:$0xff]
  %v163 = vld [vmem:[#allocation2 + $0xb8] sm:$0xff]
  %v164 = vld [vmem:[#allocation2 + $0xc0] sm:$0xff]
  %v165 = vld [vmem:[#allocation2 + $0xc8] sm:$0xff]
  %v166 = vld [vmem:[#allocation2 + $0xd0] sm:$0xff]
  %v167 = vld [vmem:[#allocation2 + $0xd8] sm:$0xff]
  %v168 = vld [vmem:[#allocation2 + $0xe0] sm:$0xff]
  %v169 = vld [vmem:[#allocation2 + $0xe8] sm:$0xff]
  %v170 = vld [vmem:[#allocation2 + $0xf0] sm:$0xff]
  %v171 = vld [vmem:[#allocation2 + $0xf8] sm:$0xff]
  %v204 = vunpack.c.l.b16 %v108
  %v205 = vunpack.c.l.b16 %v109
  %v206 = vunpack.c.l.b16 %v110
  %v207 = vunpack.c.l.b16 %v111
  %v208 = vunpack.c.l.b16 %v112
  %v209 = vunpack.c.l.b16 %v113
  %v210 = vunpack.c.l.b16 %v114
  %v211 = vunpack.c.l.b16 %v115
  %v212 = vunpack.c.l.b16 %v116
  %v213 = vunpack.c.l.b16 %v117
  %v214 = vunpack.c.l.b16 %v118
  %v215 = vunpack.c.l.b16 %v119
  %v216 = vunpack.c.l.b16 %v120
  %v217 = vunpack.c.l.b16 %v121
  %v218 = vunpack.c.l.b16 %v122
  %v219 = vunpack.c.l.b16 %v123
  %v220 = vunpack.c.l.b16 %v124
  %v221 = vunpack.c.l.b16 %v125
  %v222 = vunpack.c.l.b16 %v126
  %v223 = vunpack.c.l.b16 %v127
  %v224 = vunpack.c.l.b16 %v128
  %v225 = vunpack.c.l.b16 %v129
  %v226 = vunpack.c.l.b16 %v130
  %v227 = vunpack.c.l.b16 %v131
  %v228 = vunpack.c.l.b16 %v132
  %v229 = vunpack.c.l.b16 %v133
  %v230 = vunpack.c.l.b16 %v134
  %v231 = vunpack.c.l.b16 %v135
  %v232 = vunpack.c.l.b16 %v136
  %v233 = vunpack.c.l.b16 %v137
  %v234 = vunpack.c.l.b16 %v138
  %v235 = vunpack.c.l.b16 %v139
  %v236 = vpack.c.b16 %v205, %v204
  %v237 = vpack.c.b16 %v207, %v206
  %v238 = vpack.c.b16 %v209, %v208
  %v239 = vpack.c.b16 %v211, %v210
  %v240 = vpack.c.b16 %v213, %v212
  %v241 = vpack.c.b16 %v215, %v214
  %v242 = vpack.c.b16 %v217, %v216
  %v243 = vpack.c.b16 %v219, %v218
  %v244 = vpack.c.b16 %v221, %v220
  %v245 = vpack.c.b16 %v223, %v222
  %v246 = vpack.c.b16 %v225, %v224
  %v247 = vpack.c.b16 %v227, %v226
  %v248 = vpack.c.b16 %v229, %v228
  %v249 = vpack.c.b16 %v231, %v230
  %v250 = vpack.c.b16 %v233, %v232
  %v251 = vpack.c.b16 %v235, %v234
  %268 = vmatprep.subr.bf16.mxu0 0
  %269 = vmatpush1.bf16.msra.mxu0 %v236
  %270 = vmatprep.subr.bf16.mxu0 0
  %271 = vmatpush1.bf16.msra.mxu0 %v237
  %272 = vmatprep.subr.bf16.mxu0 0
  %273 = vmatpush1.bf16.msra.mxu0 %v238
  %274 = vmatprep.subr.bf16.mxu0 0
  %275 = vmatpush1.bf16.msra.mxu0 %v239
  %276 = vmatprep.subr.bf16.mxu0 0
  %277 = vmatpush1.bf16.msra.mxu0 %v240
  %278 = vmatprep.subr.bf16.mxu0 0
  %279 = vmatpush1.bf16.msra.mxu0 %v241
  %280 = vmatprep.subr.bf16.mxu0 0
  %281 = vmatpush1.bf16.msra.mxu0 %v242
  %282 = vmatprep.subr.bf16.mxu0 0
  %283 = vmatpush1.bf16.msra.mxu0 %v243
  %284 = vmatprep.subr.bf16.mxu0 0
  %285 = vmatpush1.bf16.msra.mxu0 %v244
  %286 = vmatprep.subr.bf16.mxu0 0
  %287 = vmatpush1.bf16.msra.mxu0 %v245
  %288 = vmatprep.subr.bf16.mxu0 0
  %289 = vmatpush1.bf16.msra.mxu0 %v246
  %290 = vmatprep.subr.bf16.mxu0 0
  %291 = vmatpush1.bf16.msra.mxu0 %v247
  %292 = vmatprep.subr.bf16.mxu0 0
  %293 = vmatpush1.bf16.msra.mxu0 %v248
  %294 = vmatprep.subr.bf16.mxu0 0
  %295 = vmatpush1.bf16.msra.mxu0 %v249
  %296 = vmatprep.subr.bf16.mxu0 0
  %297 = vmatpush1.bf16.msra.mxu0 %v250
  %298 = vmatprep.subr.bf16.mxu0 0
  %299 = vmatpush1.bf16.msra.mxu0 %v251
  %300 = vmatprep.mubr.bf16.mxu0 %v72
  %301 = vmatmul.mubr.bf16.gmra.mrb[0].mxu0 %v71
  %v302 = vpop.f32.mrb[0].mxu0
  %v303 = vadd.f32 0.0, %v302
  %v304 = vpop.f32.mrb[0].mxu0
  %v305 = vpop.f32.mrb[0].mxu0
  %v306 = vadd.f32 0.0, %v305
  %v307 = vpop.f32.mrb[0].mxu0
  %308 = vmatprep.mubr.bf16.mxu0 %v74
  %309 = vmatmul.mubr.bf16.gmra.mrb[0].mxu0 %v73
  %v310 = vpop.f32.mrb[0].mxu0
  %v311 = vadd.f32 0.0, %v310
  %v312 = vpop.f32.mrb[0].mxu0
  %v313 = vpop.f32.mrb[0].mxu0
  %v314 = vadd.f32 0.0, %v313
  %v315 = vpop.f32.mrb[0].mxu0
  %316 = vmatprep.mubr.bf16.mxu0 %v76
  %317 = vmatmul.mubr.bf16.gmra.mrb[0].mxu0 %v75
  %v318 = vpop.f32.mrb[0].mxu0
  %v319 = vadd.f32 0.0, %v318
  %v320 = vpop.f32.mrb[0].mxu0
  %v321 = vpop.f32.mrb[0].mxu0
  %v322 = vadd.f32 0.0, %v321
  %v323 = vpop.f32.mrb[0].mxu0
  %324 = vmatprep.mubr.bf16.mxu0 %v78
  %325 = vmatmul.mubr.bf16.gmra.mrb[0].mxu0 %v77
  %v326 = vpop.f32.mrb[0].mxu0
  %v327 = vadd.f32 0.0, %v326
  %v328 = vpop.f32.mrb[0].mxu0
  %v329 = vpop.f32.mrb[0].mxu0
  %v330 = vadd.f32 0.0, %v329
  %v331 = vpop.f32.mrb[0].mxu0
  %332 = vmatprep.mubr.bf16.mxu0 %v80
  %333 = vmatmul.mubr.bf16.gmra.mrb[0].mxu0 %v79
  %v334 = vpop.f32.mrb[0].mxu0
  %v335 = vadd.f32 0.0, %v334
  %v336 = vpop.f32.mrb[0].mxu0
  %v337 = vpop.f32.mrb[0].mxu0
  %v338 = vadd.f32 0.0, %v337
  %v339 = vpop.f32.mrb[0].mxu0
  %340 = vmatprep.mubr.bf16.mxu0 %v82
  %341 = vmatmul.mubr.bf16.gmra.mrb[0].mxu0 %v81
  %v342 = vpop.f32.mrb[0].mxu0
  %v343 = vadd.f32 0.0, %v342
  %v344 = vpop.f32.mrb[0].mxu0
  %v345 = vpop.f32.mrb[0].mxu0
  %v346 = vadd.f32 0.0, %v345
  %v347 = vpop.f32.mrb[0].mxu0
  %348 = vmatprep.mubr.bf16.mxu0 %v84
  %349 = vmatmul.mubr.bf16.gmra.mrb[0].mxu0 %v83
  %v350 = vpop.f32.mrb[0].mxu0
  %v351 = vadd.f32 0.0, %v350
  %v352 = vpop.f32.mrb[0].mxu0
  %v353 = vpop.f32.mrb[0].mxu0
  %v354 = vadd.f32 0.0, %v353
  %v355 = vpop.f32.mrb[0].mxu0
  %356 = vmatprep.mubr.bf16.mxu0 %v86
  %357 = vmatmul.mubr.bf16.gmra.mrb[0].mxu0 %v85
  %v358 = vpop.f32.mrb[0].mxu0
  %v359 = vadd.f32 0.0, %v358
  %v360 = vpop.f32.mrb[0].mxu0
  %v361 = vpop.f32.mrb[0].mxu0
  %v362 = vadd.f32 0.0, %v361
  %v363 = vpop.f32.mrb[0].mxu0
  %364 = vmatprep.mubr.bf16.mxu0 %v88
  %365 = vmatmul.mubr.bf16.gmra.mrb[0].mxu0 %v87
  %v366 = vpop.f32.mrb[0].mxu0
  %v367 = vadd.f32 0.0, %v366
  %v368 = vpop.f32.mrb[0].mxu0
  %v369 = vpop.f32.mrb[0].mxu0
  %v370 = vadd.f32 0.0, %v369
  %v371 = vpop.f32.mrb[0].mxu0
  %372 = vmatprep.mubr.bf16.mxu0 %v90
  %373 = vmatmul.mubr.bf16.gmra.mrb[0].mxu0 %v89
  %v374 = vpop.f32.mrb[0].mxu0
  %v375 = vadd.f32 0.0, %v374
  %v376 = vpop.f32.mrb[0].mxu0
  %v377 = vpop.f32.mrb[0].mxu0
  %v378 = vadd.f32 0.0, %v377
  %v379 = vpop.f32.mrb[0].mxu0
  %380 = vmatprep.mubr.bf16.mxu0 %v92
  %381 = vmatmul.mubr.bf16.gmra.mrb[0].mxu0 %v91
  %v382 = vpop.f32.mrb[0].mxu0
  %v383 = vadd.f32 0.0, %v382
  %v384 = vpop.f32.mrb[0].mxu0
  %v385 = vpop.f32.mrb[0].mxu0
  %v386 = vadd.f32 0.0, %v385
  %v387 = vpop.f32.mrb[0].mxu0
  %388 = vmatprep.mubr.bf16.mxu0 %v94
  %389 = vmatmul.mubr.bf16.gmra.mrb[0].mxu0 %v93
  %v390 = vpop.f32.mrb[0].mxu0
  %v391 = vadd.f32 0.0, %v390
  %v392 = vpop.f32.mrb[0].mxu0
  %v393 = vpop.f32.mrb[0].mxu0
  %v394 = vadd.f32 0.0, %v393
  %v395 = vpop.f32.mrb[0].mxu0
  %396 = vmatprep.mubr.bf16.mxu0 %v96
  %397 = vmatmul.mubr.bf16.gmra.mrb[0].mxu0 %v95
  %v398 = vpop.f32.mrb[0].mxu0
  %v399 = vadd.f32 0.0, %v398
  %v400 = vpop.f32.mrb[0].mxu0
  %v401 = vpop.f32.mrb[0].mxu0
  %v402 = vadd.f32 0.0, %v401
  %v403 = vpop.f32.mrb[0].mxu0
  %404 = vmatprep.mubr.bf16.mxu0 %v98
  %405 = vmatmul.mubr.bf16.gmra.mrb[0].mxu0 %v97
  %v406 = vpop.f32.mrb[0].mxu0
  %v407 = vadd.f32 0.0, %v406
  %v408 = vpop.f32.mrb[0].mxu0
  %v409 = vpop.f32.mrb[0].mxu0
  %v410 = vadd.f32 0.0, %v409
  %v411 = vpop.f32.mrb[0].mxu0
  %412 = vmatprep.mubr.bf16.mxu0 %v100
  %413 = vmatmul.mubr.bf16.gmra.mrb[0].mxu0 %v99
  %v414 = vpop.f32.mrb[0].mxu0
  %v415 = vadd.f32 0.0, %v414
  %v416 = vpop.f32.mrb[0].mxu0
  %v417 = vpop.f32.mrb[0].mxu0
  %v418 = vadd.f32 0.0, %v417
  %v419 = vpop.f32.mrb[0].mxu0
  %420 = vmatprep.mubr.bf16.mxu0 %v102
  %421 = vmatmul.mubr.bf16.gmra.mrb[0].mxu0 %v101
  %v422 = vpop.f32.mrb[0].mxu0
  %v423 = vadd.f32 0.0, %v422
  %v424 = vpop.f32.mrb[0].mxu0
  %v425 = vpop.f32.mrb[0].mxu0
  %v426 = vadd.f32 0.0, %v425
  %v427 = vpop.f32.mrb[0].mxu0
  %428 = vdwg.mxu0
  %v429 = vadd.f32 %v140, %v303
  %v430 = vadd.f32 %v141, %v306
  %v431 = vadd.f32 %v142, %v311
  %v432 = vadd.f32 %v143, %v314
  %v433 = vadd.f32 %v144, %v319
  %v434 = vadd.f32 %v145, %v322
  %v435 = vadd.f32 %v146, %v327
  %v436 = vadd.f32 %v147, %v330
  %v437 = vadd.f32 %v148, %v335
  %v438 = vadd.f32 %v149, %v338
  %v439 = vadd.f32 %v150, %v343
  %v440 = vadd.f32 %v151, %v346
  %v441 = vadd.f32 %v152, %v351
  %v442 = vadd.f32 %v153, %v354
  %v443 = vadd.f32 %v154, %v359
  %v444 = vadd.f32 %v155, %v362
  %v445 = vadd.f32 %v156, %v367
  %v446 = vadd.f32 %v157, %v370
  %v447 = vadd.f32 %v158, %v375
  %v448 = vadd.f32 %v159, %v378
  %v449 = vadd.f32 %v160, %v383
  %v450 = vadd.f32 %v161, %v386
  %v451 = vadd.f32 %v162, %v391
  %v452 = vadd.f32 %v163, %v394
  %v453 = vadd.f32 %v164, %v399
  %v454 = vadd.f32 %v165, %v402
  %v455 = vadd.f32 %v166, %v407
  %v456 = vadd.f32 %v167, %v410
  %v457 = vadd.f32 %v168, %v415
  %v458 = vadd.f32 %v169, %v418
  %v459 = vadd.f32 %v170, %v423
  %v460 = vadd.f32 %v171, %v426
  %vm461 = vcmask 269312
  %462 = vst.msk [vmem:[#allocation2] sm:$0xff] %vm461, %v429
  %463 = vst.msk [vmem:[#allocation2 + $0x8] sm:$0xff] %vm461, %v430
  %464 = vst.msk [vmem:[#allocation2 + $0x10] sm:$0xff] %vm461, %v431
  %465 = vst.msk [vmem:[#allocation2 + $0x18] sm:$0xff] %vm461, %v432
  %466 = vst.msk [vmem:[#allocation2 + $0x20] sm:$0xff] %vm461, %v433
  %467 = vst.msk [vmem:[#allocation2 + $0x28] sm:$0xff] %vm461, %v434
  %468 = vst.msk [vmem:[#allocation2 + $0x30] sm:$0xff] %vm461, %v435
  %469 = vst.msk [vmem:[#allocation2 + $0x38] sm:$0xff] %vm461, %v436
  %470 = vst.msk [vmem:[#allocation2 + $0x40] sm:$0xff] %vm461, %v437
  %471 = vst.msk [vmem:[#allocation2 + $0x48] sm:$0xff] %vm461, %v438
  %472 = vst.msk [vmem:[#allocation2 + $0x50] sm:$0xff] %vm461, %v439
  %473 = vst.msk [vmem:[#allocation2 + $0x58] sm:$0xff] %vm461, %v440
  %474 = vst.msk [vmem:[#allocation2 + $0x60] sm:$0xff] %vm461, %v441
  %475 = vst.msk [vmem:[#allocation2 + $0x68] sm:$0xff] %vm461, %v442
  %476 = vst.msk [vmem:[#allocation2 + $0x70] sm:$0xff] %vm461, %v443
  %477 = vst.msk [vmem:[#allocation2 + $0x78] sm:$0xff] %vm461, %v444
  %478 = vst.msk [vmem:[#allocation2 + $0x80] sm:$0xff] %vm461, %v445
  %479 = vst.msk [vmem:[#allocation2 + $0x88] sm:$0xff] %vm461, %v446
  %480 = vst.msk [vmem:[#allocation2 + $0x90] sm:$0xff] %vm461, %v447
  %481 = vst.msk [vmem:[#allocation2 + $0x98] sm:$0xff] %vm461, %v448
  %482 = vst.msk [vmem:[#allocation2 + $0xa0] sm:$0xff] %vm461, %v449
  %483 = vst.msk [vmem:[#allocation2 + $0xa8] sm:$0xff] %vm461, %v450
  %484 = vst.msk [vmem:[#allocation2 + $0xb0] sm:$0xff] %vm461, %v451
  %485 = vst.msk [vmem:[#allocation2 + $0xb8] sm:$0xff] %vm461, %v452
  %486 = vst.msk [vmem:[#allocation2 + $0xc0] sm:$0xff] %vm461, %v453
  %487 = vst.msk [vmem:[#allocation2 + $0xc8] sm:$0xff] %vm461, %v454
  %488 = vst.msk [vmem:[#allocation2 + $0xd0] sm:$0xff] %vm461, %v455
  %489 = vst.msk [vmem:[#allocation2 + $0xd8] sm:$0xff] %vm461, %v456
  %490 = vst.msk [vmem:[#allocation2 + $0xe0] sm:$0xff] %vm461, %v457
  %491 = vst.msk [vmem:[#allocation2 + $0xe8] sm:$0xff] %vm461, %v458
  %492 = vst.msk [vmem:[#allocation2 + $0xf0] sm:$0xff] %vm461, %v459
  %493 = vst.msk [vmem:[#allocation2 + $0xf8] sm:$0xff] %vm461, %v460
  // Predicated region
  $region22: #{gcn_forward.3} parent=0 // pred_check
    %p494 = pneg %p18
  $region23: #{gcn_forward.3} parent=0 // pred_check_branch
    %496 = sbr.rel (%p494) target = $region25
  $region24: #{gcn_forward.3} parent=0 // pred_region
    %v497 = vld [vmem:[#allocation2] sm:$0xff]
    %v498 = vld [vmem:[#allocation2 + $0x8] sm:$0xff]
    %v499 = vld [vmem:[#allocation2 + $0x10] sm:$0xff]
    %v500 = vld [vmem:[#allocation2 + $0x18] sm:$0xff]
    %v501 = vld [vmem:[#allocation2 + $0x20] sm:$0xff]
    %v502 = vld [vmem:[#allocation2 + $0x28] sm:$0xff]
    %v503 = vld [vmem:[#allocation2 + $0x30] sm:$0xff]
    %v504 = vld [vmem:[#allocation2 + $0x38] sm:$0xff]
    %v505 = vld [vmem:[#allocation2 + $0x40] sm:$0xff]
    %v506 = vld [vmem:[#allocation2 + $0x48] sm:$0xff]
    %v507 = vld [vmem:[#allocation2 + $0x50] sm:$0xff]
    %v508 = vld [vmem:[#allocation2 + $0x58] sm:$0xff]
    %v509 = vld [vmem:[#allocation2 + $0x60] sm:$0xff]
    %v510 = vld [vmem:[#allocation2 + $0x68] sm:$0xff]
    %v511 = vld [vmem:[#allocation2 + $0x70] sm:$0xff]
    %v512 = vld [vmem:[#allocation2 + $0x78] sm:$0xff]
    %v513 = vld [vmem:[#allocation2 + $0x80] sm:$0xff]
    %v514 = vld [vmem:[#allocation2 + $0x88] sm:$0xff]
    %v515 = vld [vmem:[#allocation2 + $0x90] sm:$0xff]
    %v516 = vld [vmem:[#allocation2 + $0x98] sm:$0xff]
    %v517 = vld [vmem:[#allocation2 + $0xa0] sm:$0xff]
    %v518 = vld [vmem:[#allocation2 + $0xa8] sm:$0xff]
    %v519 = vld [vmem:[#allocation2 + $0xb0] sm:$0xff]
    %v520 = vld [vmem:[#allocation2 + $0xb8] sm:$0xff]
    %v521 = vld [vmem:[#allocation2 + $0xc0] sm:$0xff]
    %v522 = vld [vmem:[#allocation2 + $0xc8] sm:$0xff]
    %v523 = vld [vmem:[#allocation2 + $0xd0] sm:$0xff]
    %v524 = vld [vmem:[#allocation2 + $0xd8] sm:$0xff]
    %v525 = vld [vmem:[#allocation2 + $0xe0] sm:$0xff]
    %v526 = vld [vmem:[#allocation2 + $0xe8] sm:$0xff]
    %v527 = vld [vmem:[#allocation2 + $0xf0] sm:$0xff]
    %v528 = vld [vmem:[#allocation2 + $0xf8] sm:$0xff]
    %v529 = vmax.f32 %v497, 1.0
    %v530 = vmax.f32 %v498, 1.0
    %v531 = vmax.f32 %v499, 1.0
    %v532 = vmax.f32 %v500, 1.0
    %v533 = vmax.f32 %v501, 1.0
    %v534 = vmax.f32 %v502, 1.0
    %v535 = vmax.f32 %v503, 1.0
    %v536 = vmax.f32 %v504, 1.0
    %v537 = vmax.f32 %v505, 1.0
    %v538 = vmax.f32 %v506, 1.0
    %v539 = vmax.f32 %v507, 1.0
    %v540 = vmax.f32 %v508, 1.0
    %v541 = vmax.f32 %v509, 1.0
    %v542 = vmax.f32 %v510, 1.0
    %v543 = vmax.f32 %v511, 1.0
    %v544 = vmax.f32 %v512, 1.0
    %v545 = vmax.f32 %v513, 1.0
    %v546 = vmax.f32 %v514, 1.0
    %v547 = vmax.f32 %v515, 1.0
    %v548 = vmax.f32 %v516, 1.0
    %v549 = vmax.f32 %v517, 1.0
    %v550 = vmax.f32 %v518, 1.0
    %v551 = vmax.f32 %v519, 1.0
    %v552 = vmax.f32 %v520, 1.0
    %v553 = vmax.f32 %v521, 1.0
    %v554 = vmax.f32 %v522, 1.0
    %v555 = vmax.f32 %v523, 1.0
    %v556 = vmax.f32 %v524, 1.0
    %v557 = vmax.f32 %v525, 1.0
    %v558 = vmax.f32 %v526, 1.0
    %v559 = vmax.f32 %v527, 1.0
    %v560 = vmax.f32 %v528, 1.0
    %v561 = vrsqrt.pop %v529
    %v562 = vrsqrt.pop %v530
    %v563 = vrsqrt.pop %v531
    %v564 = vrsqrt.pop %v532
    %v565 = vrsqrt.pop %v533
    %v566 = vrsqrt.pop %v534
    %v567 = vrsqrt.pop %v535
    %v568 = vrsqrt.pop %v536
    %v569 = vrsqrt.pop %v537
    %v570 = vrsqrt.pop %v538
    %v571 = vrsqrt.pop %v539
    %v572 = vrsqrt.pop %v540
    %v573 = vrsqrt.pop %v541
    %v574 = vrsqrt.pop %v542
    %v575 = vrsqrt.pop %v543
    %v576 = vrsqrt.pop %v544
    %v577 = vrsqrt.pop %v545
    %v578 = vrsqrt.pop %v546
    %v579 = vrsqrt.pop %v547
    %v580 = vrsqrt.pop %v548
    %v581 = vrsqrt.pop %v549
    %v582 = vrsqrt.pop %v550
    %v583 = vrsqrt.pop %v551
    %v584 = vrsqrt.pop %v552
    %v585 = vrsqrt.pop %v553
    %v586 = vrsqrt.pop %v554
    %v587 = vrsqrt.pop %v555
    %v588 = vrsqrt.pop %v556
    %v589 = vrsqrt.pop %v557
    %v590 = vrsqrt.pop %v558
    %v591 = vrsqrt.pop %v559
    %v592 = vrsqrt.pop %v560
    %v593 = vld [vmem:[%s2] sm:$0xff]
    %v594 = vld [vmem:[%s2 + $0x8] sm:$0xff]
    %v595 = vld [vmem:[%s2 + $0x10] sm:$0xff]
    %v596 = vld [vmem:[%s2 + $0x18] sm:$0xff]
    %v597 = vld [vmem:[%s2 + $0x20] sm:$0x1]
    %v599 = vsel %vm461, %v497, 0
    %v602 = vsel %vm461, %v498, 0
    %v605 = vsel %vm461, %v499, 0
    %v608 = vsel %vm461, %v500, 0
    %v611 = vsel %vm461, %v501, 0
    %v614 = vsel %vm461, %v502, 0
    %v617 = vsel %vm461, %v503, 0
    %v620 = vsel %vm461, %v504, 0
    %v623 = vsel %vm461, %v505, 0
    %v626 = vsel %vm461, %v506, 0
    %v629 = vsel %vm461, %v507, 0
    %v632 = vsel %vm461, %v508, 0
    %v635 = vsel %vm461, %v509, 0
    %v638 = vsel %vm461, %v510, 0
    %v641 = vsel %vm461, %v511, 0
    %v644 = vsel %vm461, %v512, 0
    %v647 = vsel %vm461, %v513, 0
    %v650 = vsel %vm461, %v514, 0
    %v653 = vsel %vm461, %v515, 0
    %v656 = vsel %vm461, %v516, 0
    %v659 = vsel %vm461, %v517, 0
    %v662 = vsel %vm461, %v518, 0
    %v665 = vsel %vm461, %v519, 0
    %v668 = vsel %vm461, %v520, 0
    %v671 = vsel %vm461, %v521, 0
    %v674 = vsel %vm461, %v522, 0
    %v677 = vsel %vm461, %v523, 0
    %v680 = vsel %vm461, %v524, 0
    %v683 = vsel %vm461, %v525, 0
    %v686 = vsel %vm461, %v526, 0
    %v689 = vsel %vm461, %v527, 0
    %v692 = vsel %vm461, %v528, 0
    %vm694 = vcmask 1040384
    %v696 = vsel %vm694, %v597, 0
    %698 = vmatprep.subr.mxu0 0.0
    %699 = vmatpush1.msra.mxu0 %v593
    %700 = vmatprep.subr.mxu0 0.0
    %701 = vmatpush1.msra.mxu0 %v594
    %702 = vmatprep.subr.mxu0 0.0
    %703 = vmatpush1.msra.mxu0 %v595
    %704 = vmatprep.subr.mxu0 0.0
    %705 = vmatpush1.msra.mxu0 %v596
    %706 = vmatprep.subr.mxu0 0.0
    %707 = vmatpush1.msra.mxu0 %v696
    %708 = vmatprep.subr.mxu0 0.0
    %709 = vmatpush1.msra.mxu0 0.0
    %710 = vmatprep.subr.mxu0 0.0
    %711 = vmatpush1.msra.mxu0 0.0
    %712 = vmatprep.subr.mxu0 0.0
    %713 = vmatpush1.msra.mxu0 0.0
    %714 = vmatprep.subr.mxu0 0.0
    %715 = vmatpush1.msra.mxu0 0.0
    %716 = vmatprep.subr.mxu0 0.0
    %717 = vmatpush1.msra.mxu0 0.0
    %718 = vmatprep.subr.mxu0 0.0
    %719 = vmatpush1.msra.mxu0 0.0
    %720 = vmatprep.subr.mxu0 0.0
    %721 = vmatpush1.msra.mxu0 0.0
    %722 = vmatprep.subr.mxu0 0.0
    %723 = vmatpush1.msra.mxu0 0.0
    %724 = vmatprep.subr.mxu0 0.0
    %725 = vmatpush1.msra.mxu0 0.0
    %726 = vmatprep.subr.mxu0 0.0
    %727 = vmatpush1.msra.mxu0 0.0
    %728 = vmatprep.subr.mxu0 0.0
    %729 = vmatpush1.msra.mxu0 0.0
    %730 = vmatprep.subr.mxu0 0.0
    %731 = vmatpush1.msra.mxu0 0.0
    %732 = vmatprep.subr.mxu0 0.0
    %733 = vmatpush1.msra.mxu0 0.0
    %734 = vmatprep.subr.mxu0 0.0
    %735 = vmatpush1.msra.mxu0 0.0
    %736 = vmatprep.subr.mxu0 0.0
    %737 = vmatpush1.msra.mxu0 0.0
    %738 = vmatprep.subr.mxu0 0.0
    %739 = vmatpush1.msra.mxu0 0.0
    %740 = vmatprep.subr.mxu0 0.0
    %741 = vmatpush1.msra.mxu0 0.0
    %742 = vmatprep.subr.mxu0 0.0
    %743 = vmatpush1.msra.mxu0 0.0
    %744 = vmatprep.subr.mxu0 0.0
    %745 = vmatpush1.msra.mxu0 0.0
    %746 = vmatprep.subr.mxu0 0.0
    %747 = vmatpush1.msra.mxu0 0.0
    %748 = vmatprep.subr.mxu0 0.0
    %749 = vmatpush1.msra.mxu0 0.0
    %750 = vmatprep.subr.mxu0 0.0
    %751 = vmatpush1.msra.mxu0 0.0
    %752 = vmatprep.subr.mxu0 0.0
    %753 = vmatpush1.msra.mxu0 0.0
    %754 = vmatprep.subr.mxu0 0.0
    %755 = vmatpush1.msra.mxu0 0.0
    %756 = vmatprep.subr.mxu0 0.0
    %757 = vmatpush1.msra.mxu0 0.0
    %758 = vmatprep.subr.mxu0 0.0
    %759 = vmatpush1.msra.mxu0 0.0
    %760 = vmatprep.subr.mxu0 0.0
    %761 = vmatpush1.msra.mxu0 0.0
    %762 = vmatprep.mubr.f32.mxu0 0.0
    %763 = vmatmul.mubr.f32.gmra.mrb[0].mxu0 %v599
    %v764 = vpop.f32.mrb[0].mxu0
    %v765 = vadd.f32 0.0, %v764
    %v766 = vpop.f32.mrb[0].mxu0
    %767 = vmatprep.mubr.f32.mxu0 0.0
    %768 = vmatmul.mubr.f32.gmra.mrb[0].mxu0 %v602
    %v769 = vpop.f32.mrb[0].mxu0
    %v770 = vadd.f32 0.0, %v769
    %v771 = vpop.f32.mrb[0].mxu0
    %772 = vmatprep.mubr.f32.mxu0 0.0
    %773 = vmatmul.mubr.f32.gmra.mrb[0].mxu0 %v605
    %v774 = vpop.f32.mrb[0].mxu0
    %v775 = vadd.f32 0.0, %v774
    %v776 = vpop.f32.mrb[0].mxu0
    %777 = vmatprep.mubr.f32.mxu0 0.0
    %778 = vmatmul.mubr.f32.gmra.mrb[0].mxu0 %v608
    %v779 = vpop.f32.mrb[0].mxu0
    %v780 = vadd.f32 0.0, %v779
    %v781 = vpop.f32.mrb[0].mxu0
    %782 = vmatprep.mubr.f32.mxu0 0.0
    %783 = vmatmul.mubr.f32.gmra.mrb[0].mxu0 %v611
    %v784 = vpop.f32.mrb[0].mxu0
    %v785 = vadd.f32 0.0, %v784
    %v786 = vpop.f32.mrb[0].mxu0
    %787 = vmatprep.mubr.f32.mxu0 0.0
    %788 = vmatmul.mubr.f32.gmra.mrb[0].mxu0 %v614
    %v789 = vpop.f32.mrb[0].mxu0
    %v790 = vadd.f32 0.0, %v789
    %v791 = vpop.f32.mrb[0].mxu0
    %792 = vmatprep.mubr.f32.mxu0 0.0
    %793 = vmatmul.mubr.f32.gmra.mrb[0].mxu0 %v617
    %v794 = vpop.f32.mrb[0].mxu0
    %v795 = vadd.f32 0.0, %v794
    %v796 = vpop.f32.mrb[0].mxu0
    %797 = vmatprep.mubr.f32.mxu0 0.0
    %798 = vmatmul.mubr.f32.gmra.mrb[0].mxu0 %v620
    %v799 = vpop.f32.mrb[0].mxu0
    %v800 = vadd.f32 0.0, %v799
    %v801 = vpop.f32.mrb[0].mxu0
    %802 = vmatprep.mubr.f32.mxu0 0.0
    %803 = vmatmul.mubr.f32.gmra.mrb[0].mxu0 %v623
    %v804 = vpop.f32.mrb[0].mxu0
    %v805 = vadd.f32 0.0, %v804
    %v806 = vpop.f32.mrb[0].mxu0
    %807 = vmatprep.mubr.f32.mxu0 0.0
    %808 = vmatmul.mubr.f32.gmra.mrb[0].mxu0 %v626
    %v809 = vpop.f32.mrb[0].mxu0
    %v810 = vadd.f32 0.0, %v809
    %v811 = vpop.f32.mrb[0].mxu0
    %812 = vmatprep.mubr.f32.mxu0 0.0
    %813 = vmatmul.mubr.f32.gmra.mrb[0].mxu0 %v629
    %v814 = vpop.f32.mrb[0].mxu0
    %v815 = vadd.f32 0.0, %v814
    %v816 = vpop.f32.mrb[0].mxu0
    %817 = vmatprep.mubr.f32.mxu0 0.0
    %818 = vmatmul.mubr.f32.gmra.mrb[0].mxu0 %v632
    %v819 = vpop.f32.mrb[0].mxu0
    %v820 = vadd.f32 0.0, %v819
    %v821 = vpop.f32.mrb[0].mxu0
    %822 = vmatprep.mubr.f32.mxu0 0.0
    %823 = vmatmul.mubr.f32.gmra.mrb[0].mxu0 %v635
    %v824 = vpop.f32.mrb[0].mxu0
    %v825 = vadd.f32 0.0, %v824
    %v826 = vpop.f32.mrb[0].mxu0
    %827 = vmatprep.mubr.f32.mxu0 0.0
    %828 = vmatmul.mubr.f32.gmra.mrb[0].mxu0 %v638
    %v829 = vpop.f32.mrb[0].mxu0
    %v830 = vadd.f32 0.0, %v829
    %v831 = vpop.f32.mrb[0].mxu0
    %832 = vmatprep.mubr.f32.mxu0 0.0
    %833 = vmatmul.mubr.f32.gmra.mrb[0].mxu0 %v641
    %v834 = vpop.f32.mrb[0].mxu0
    %v835 = vadd.f32 0.0, %v834
    %v836 = vpop.f32.mrb[0].mxu0
    %837 = vmatprep.mubr.f32.mxu0 0.0
    %838 = vmatmul.mubr.f32.gmra.mrb[0].mxu0 %v644
    %v839 = vpop.f32.mrb[0].mxu0
    %v840 = vadd.f32 0.0, %v839
    %v841 = vpop.f32.mrb[0].mxu0
    %842 = vmatprep.mubr.f32.mxu0 0.0
    %843 = vmatmul.mubr.f32.gmra.mrb[0].mxu0 %v647
    %v844 = vpop.f32.mrb[0].mxu0
    %v845 = vadd.f32 0.0, %v844
    %v846 = vpop.f32.mrb[0].mxu0
    %847 = vmatprep.mubr.f32.mxu0 0.0
    %848 = vmatmul.mubr.f32.gmra.mrb[0].mxu0 %v650
    %v849 = vpop.f32.mrb[0].mxu0
    %v850 = vadd.f32 0.0, %v849
    %v851 = vpop.f32.mrb[0].mxu0
    %852 = vmatprep.mubr.f32.mxu0 0.0
    %853 = vmatmul.mubr.f32.gmra.mrb[0].mxu0 %v653
    %v854 = vpop.f32.mrb[0].mxu0
    %v855 = vadd.f32 0.0, %v854
    %v856 = vpop.f32.mrb[0].mxu0
    %857 = vmatprep.mubr.f32.mxu0 0.0
    %858 = vmatmul.mubr.f32.gmra.mrb[0].mxu0 %v656
    %v859 = vpop.f32.mrb[0].mxu0
    %v860 = vadd.f32 0.0, %v859
    %v861 = vpop.f32.mrb[0].mxu0
    %862 = vmatprep.mubr.f32.mxu0 0.0
    %863 = vmatmul.mubr.f32.gmra.mrb[0].mxu0 %v659
    %v864 = vpop.f32.mrb[0].mxu0
    %v865 = vadd.f32 0.0, %v864
    %v866 = vpop.f32.mrb[0].mxu0
    %867 = vmatprep.mubr.f32.mxu0 0.0
    %868 = vmatmul.mubr.f32.gmra.mrb[0].mxu0 %v662
    %v869 = vpop.f32.mrb[0].mxu0
    %v870 = vadd.f32 0.0, %v869
    %v871 = vpop.f32.mrb[0].mxu0
    %872 = vmatprep.mubr.f32.mxu0 0.0
    %873 = vmatmul.mubr.f32.gmra.mrb[0].mxu0 %v665
    %v874 = vpop.f32.mrb[0].mxu0
    %v875 = vadd.f32 0.0, %v874
    %v876 = vpop.f32.mrb[0].mxu0
    %877 = vmatprep.mubr.f32.mxu0 0.0
    %878 = vmatmul.mubr.f32.gmra.mrb[0].mxu0 %v668
    %v879 = vpop.f32.mrb[0].mxu0
    %v880 = vadd.f32 0.0, %v879
    %v881 = vpop.f32.mrb[0].mxu0
    %882 = vmatprep.mubr.f32.mxu0 0.0
    %883 = vmatmul.mubr.f32.gmra.mrb[0].mxu0 %v671
    %v884 = vpop.f32.mrb[0].mxu0
    %v885 = vadd.f32 0.0, %v884
    %v886 = vpop.f32.mrb[0].mxu0
    %887 = vmatprep.mubr.f32.mxu0 0.0
    %888 = vmatmul.mubr.f32.gmra.mrb[0].mxu0 %v674
    %v889 = vpop.f32.mrb[0].mxu0
    %v890 = vadd.f32 0.0, %v889
    %v891 = vpop.f32.mrb[0].mxu0
    %892 = vmatprep.mubr.f32.mxu0 0.0
    %893 = vmatmul.mubr.f32.gmra.mrb[0].mxu0 %v677
    %v894 = vpop.f32.mrb[0].mxu0
    %v895 = vadd.f32 0.0, %v894
    %v896 = vpop.f32.mrb[0].mxu0
    %897 = vmatprep.mubr.f32.mxu0 0.0
    %898 = vmatmul.mubr.f32.gmra.mrb[0].mxu0 %v680
    %v899 = vpop.f32.mrb[0].mxu0
    %v900 = vadd.f32 0.0, %v899
    %v901 = vpop.f32.mrb[0].mxu0
    %902 = vmatprep.mubr.f32.mxu0 0.0
    %903 = vmatmul.mubr.f32.gmra.mrb[0].mxu0 %v683
    %v904 = vpop.f32.mrb[0].mxu0
    %v905 = vadd.f32 0.0, %v904
    %v906 = vpop.f32.mrb[0].mxu0
    %907 = vmatprep.mubr.f32.mxu0 0.0
    %908 = vmatmul.mubr.f32.gmra.mrb[0].mxu0 %v686
    %v909 = vpop.f32.mrb[0].mxu0
    %v910 = vadd.f32 0.0, %v909
    %v911 = vpop.f32.mrb[0].mxu0
    %912 = vmatprep.mubr.f32.mxu0 0.0
    %913 = vmatmul.mubr.f32.gmra.mrb[0].mxu0 %v689
    %v914 = vpop.f32.mrb[0].mxu0
    %v915 = vadd.f32 0.0, %v914
    %v916 = vpop.f32.mrb[0].mxu0
    %917 = vmatprep.mubr.f32.mxu0 0.0
    %918 = vmatmul.mubr.f32.gmra.mrb[0].mxu0 %v692
    %v919 = vpop.f32.mrb[0].mxu0
    %v920 = vadd.f32 0.0, %v919
    %v921 = vpop.f32.mrb[0].mxu0
    %922 = vdwg.mxu0
    %924 = vset.pattern.permute.xlu0 32
    %925 = vperm.xlu0 %924, %v561
    %v926 = vpop.permute.xlu0 %925
    %929 = vset.pattern.permute.xlu0 32
    %930 = vperm.xlu0 %929, %v562
    %v931 = vpop.permute.xlu0 %930
    %934 = vset.pattern.permute.xlu0 32
    %935 = vperm.xlu0 %934, %v563
    %v936 = vpop.permute.xlu0 %935
    %939 = vset.pattern.permute.xlu0 32
    %940 = vperm.xlu0 %939, %v564
    %v941 = vpop.permute.xlu0 %940
    %944 = vset.pattern.permute.xlu0 32
    %945 = vperm.xlu0 %944, %v565
    %v946 = vpop.permute.xlu0 %945
    %949 = vset.pattern.permute.xlu0 32
    %950 = vperm.xlu0 %949, %v566
    %v951 = vpop.permute.xlu0 %950
    %954 = vset.pattern.permute.xlu0 32
    %955 = vperm.xlu0 %954, %v567
    %v956 = vpop.permute.xlu0 %955
    %959 = vset.pattern.permute.xlu0 32
    %960 = vperm.xlu0 %959, %v568
    %v961 = vpop.permute.xlu0 %960
    %964 = vset.pattern.permute.xlu0 32
    %965 = vperm.xlu0 %964, %v569
    %v966 = vpop.permute.xlu0 %965
    %969 = vset.pattern.permute.xlu0 32
    %970 = vperm.xlu0 %969, %v570
    %v971 = vpop.permute.xlu0 %970
    %974 = vset.pattern.permute.xlu0 32
    %975 = vperm.xlu0 %974, %v571
    %v976 = vpop.permute.xlu0 %975
    %979 = vset.pattern.permute.xlu0 32
    %980 = vperm.xlu0 %979, %v572
    %v981 = vpop.permute.xlu0 %980
    %984 = vset.pattern.permute.xlu0 32
    %985 = vperm.xlu0 %984, %v573
    %v986 = vpop.permute.xlu0 %985
    %989 = vset.pattern.permute.xlu0 32
    %990 = vperm.xlu0 %989, %v574
    %v991 = vpop.permute.xlu0 %990
    %994 = vset.pattern.permute.xlu0 32
    %995 = vperm.xlu0 %994, %v575
    %v996 = vpop.permute.xlu0 %995
    %999 = vset.pattern.permute.xlu0 32
    %1000 = vperm.xlu0 %999, %v576
    %v1001 = vpop.permute.xlu0 %1000
    %1004 = vset.pattern.permute.xlu0 32
    %1005 = vperm.xlu0 %1004, %v577
    %v1006 = vpop.permute.xlu0 %1005
    %1009 = vset.pattern.permute.xlu0 32
    %1010 = vperm.xlu0 %1009, %v578
    %v1011 = vpop.permute.xlu0 %1010
    %1014 = vset.pattern.permute.xlu0 32
    %1015 = vperm.xlu0 %1014, %v579
    %v1016 = vpop.permute.xlu0 %1015
    %1019 = vset.pattern.permute.xlu0 32
    %1020 = vperm.xlu0 %1019, %v580
    %v1021 = vpop.permute.xlu0 %1020
    %1024 = vset.pattern.permute.xlu0 32
    %1025 = vperm.xlu0 %1024, %v581
    %v1026 = vpop.permute.xlu0 %1025
    %1029 = vset.pattern.permute.xlu0 32
    %1030 = vperm.xlu0 %1029, %v582
    %v1031 = vpop.permute.xlu0 %1030
    %1034 = vset.pattern.permute.xlu0 32
    %1035 = vperm.xlu0 %1034, %v583
    %v1036 = vpop.permute.xlu0 %1035
    %1039 = vset.pattern.permute.xlu0 32
    %1040 = vperm.xlu0 %1039, %v584
    %v1041 = vpop.permute.xlu0 %1040
    %1044 = vset.pattern.permute.xlu0 32
    %1045 = vperm.xlu0 %1044, %v585
    %v1046 = vpop.permute.xlu0 %1045
    %1049 = vset.pattern.permute.xlu0 32
    %1050 = vperm.xlu0 %1049, %v586
    %v1051 = vpop.permute.xlu0 %1050
    %1054 = vset.pattern.permute.xlu0 32
    %1055 = vperm.xlu0 %1054, %v587
    %v1056 = vpop.permute.xlu0 %1055
    %1059 = vset.pattern.permute.xlu0 32
    %1060 = vperm.xlu0 %1059, %v588
    %v1061 = vpop.permute.xlu0 %1060
    %1064 = vset.pattern.permute.xlu0 32
    %1065 = vperm.xlu0 %1064, %v589
    %v1066 = vpop.permute.xlu0 %1065
    %1069 = vset.pattern.permute.xlu0 32
    %1070 = vperm.xlu0 %1069, %v590
    %v1071 = vpop.permute.xlu0 %1070
    %1074 = vset.pattern.permute.xlu0 32
    %1075 = vperm.xlu0 %1074, %v591
    %v1076 = vpop.permute.xlu0 %1075
    %1079 = vset.pattern.permute.xlu0 32
    %1080 = vperm.xlu0 %1079, %v592
    %v1081 = vpop.permute.xlu0 %1080
    %v1083 = vmul.f32 %v765, %v926
    %v1084 = vmul.f32 %v770, %v931
    %v1085 = vmul.f32 %v775, %v936
    %v1086 = vmul.f32 %v780, %v941
    %v1087 = vmul.f32 %v785, %v946
    %v1088 = vmul.f32 %v790, %v951
    %v1089 = vmul.f32 %v795, %v956
    %v1090 = vmul.f32 %v800, %v961
    %v1091 = vmul.f32 %v805, %v966
    %v1092 = vmul.f32 %v810, %v971
    %v1093 = vmul.f32 %v815, %v976
    %v1094 = vmul.f32 %v820, %v981
    %v1095 = vmul.f32 %v825, %v986
    %v1096 = vmul.f32 %v830, %v991
    %v1097 = vmul.f32 %v835, %v996
    %v1098 = vmul.f32 %v840, %v1001
    %v1099 = vmul.f32 %v845, %v1006
    %v1100 = vmul.f32 %v850, %v1011
    %v1101 = vmul.f32 %v855, %v1016
    %v1102 = vmul.f32 %v860, %v1021
    %v1103 = vmul.f32 %v865, %v1026
    %v1104 = vmul.f32 %v870, %v1031
    %v1105 = vmul.f32 %v875, %v1036
    %v1106 = vmul.f32 %v880, %v1041
    %v1107 = vmul.f32 %v885, %v1046
    %v1108 = vmul.f32 %v890, %v1051
    %v1109 = vmul.f32 %v895, %v1056
    %v1110 = vmul.f32 %v900, %v1061
    %v1111 = vmul.f32 %v905, %v1066
    %v1112 = vmul.f32 %v910, %v1071
    %v1113 = vmul.f32 %v915, %v1076
    %v1114 = vmul.f32 %v920, %v1081
    %v1115 = vld [vmem:[%s3] sm:$0x1]
    %v1117 = vlaneseq
    %v1118 = vshrl.u32 %v1117, 7
    %v1119 = vsub.s32 0, %v1118
    %v1120 = vrot.slane %v1115, %v1119
    %v1122 = vadd.f32 %v1083, %v1120
    %v1123 = vadd.f32 %v1084, %v1120
    %v1124 = vadd.f32 %v1085, %v1120
    %v1125 = vadd.f32 %v1086, %v1120
    %v1126 = vadd.f32 %v1087, %v1120
    %v1127 = vadd.f32 %v1088, %v1120
    %v1128 = vadd.f32 %v1089, %v1120
    %v1129 = vadd.f32 %v1090, %v1120
    %v1130 = vadd.f32 %v1091, %v1120
    %v1131 = vadd.f32 %v1092, %v1120
    %v1132 = vadd.f32 %v1093, %v1120
    %v1133 = vadd.f32 %v1094, %v1120
    %v1134 = vadd.f32 %v1095, %v1120
    %v1135 = vadd.f32 %v1096, %v1120
    %v1136 = vadd.f32 %v1097, %v1120
    %v1137 = vadd.f32 %v1098, %v1120
    %v1138 = vadd.f32 %v1099, %v1120
    %v1139 = vadd.f32 %v1100, %v1120
    %v1140 = vadd.f32 %v1101, %v1120
    %v1141 = vadd.f32 %v1102, %v1120
    %v1142 = vadd.f32 %v1103, %v1120
    %v1143 = vadd.f32 %v1104, %v1120
    %v1144 = vadd.f32 %v1105, %v1120
    %v1145 = vadd.f32 %v1106, %v1120
    %v1146 = vadd.f32 %v1107, %v1120
    %v1147 = vadd.f32 %v1108, %v1120
    %v1148 = vadd.f32 %v1109, %v1120
    %v1149 = vadd.f32 %v1110, %v1120
    %v1150 = vadd.f32 %v1111, %v1120
    %v1151 = vadd.f32 %v1112, %v1120
    %v1152 = vadd.f32 %v1113, %v1120
    %v1153 = vadd.f32 %v1114, %v1120
    %v1154 = vmax.f32 %v1122, 0.0
    %v1155 = vmax.f32 %v1123, 0.0
    %v1156 = vmax.f32 %v1124, 0.0
    %v1157 = vmax.f32 %v1125, 0.0
    %v1158 = vmax.f32 %v1126, 0.0
    %v1159 = vmax.f32 %v1127, 0.0
    %v1160 = vmax.f32 %v1128, 0.0
    %v1161 = vmax.f32 %v1129, 0.0
    %v1162 = vmax.f32 %v1130, 0.0
    %v1163 = vmax.f32 %v1131, 0.0
    %v1164 = vmax.f32 %v1132, 0.0
    %v1165 = vmax.f32 %v1133, 0.0
    %v1166 = vmax.f32 %v1134, 0.0
    %v1167 = vmax.f32 %v1135, 0.0
    %v1168 = vmax.f32 %v1136, 0.0
    %v1169 = vmax.f32 %v1137, 0.0
    %v1170 = vmax.f32 %v1138, 0.0
    %v1171 = vmax.f32 %v1139, 0.0
    %v1172 = vmax.f32 %v1140, 0.0
    %v1173 = vmax.f32 %v1141, 0.0
    %v1174 = vmax.f32 %v1142, 0.0
    %v1175 = vmax.f32 %v1143, 0.0
    %v1176 = vmax.f32 %v1144, 0.0
    %v1177 = vmax.f32 %v1145, 0.0
    %v1178 = vmax.f32 %v1146, 0.0
    %v1179 = vmax.f32 %v1147, 0.0
    %v1180 = vmax.f32 %v1148, 0.0
    %v1181 = vmax.f32 %v1149, 0.0
    %v1182 = vmax.f32 %v1150, 0.0
    %v1183 = vmax.f32 %v1151, 0.0
    %v1184 = vmax.f32 %v1152, 0.0
    %v1185 = vmax.f32 %v1153, 0.0
    %1186 = vst [vmem:[%s4] sm:$0xff] %v1154
    %1187 = vst [vmem:[%s4 + $0x8] sm:$0xff] %v1155
    %1188 = vst [vmem:[%s4 + $0x10] sm:$0xff] %v1156
    %1189 = vst [vmem:[%s4 + $0x18] sm:$0xff] %v1157
    %1190 = vst [vmem:[%s4 + $0x20] sm:$0xff] %v1158
    %1191 = vst [vmem:[%s4 + $0x28] sm:$0xff] %v1159
    %1192 = vst [vmem:[%s4 + $0x30] sm:$0xff] %v1160
    %1193 = vst [vmem:[%s4 + $0x38] sm:$0xff] %v1161
    %1194 = vst [vmem:[%s4 + $0x40] sm:$0xff] %v1162
    %1195 = vst [vmem:[%s4 + $0x48] sm:$0xff] %v1163
    %1196 = vst [vmem:[%s4 + $0x50] sm:$0xff] %v1164
    %1197 = vst [vmem:[%s4 + $0x58] sm:$0xff] %v1165
    %1198 = vst [vmem:[%s4 + $0x60] sm:$0xff] %v1166
    %1199 = vst [vmem:[%s4 + $0x68] sm:$0xff] %v1167
    %1200 = vst [vmem:[%s4 + $0x70] sm:$0xff] %v1168
    %1201 = vst [vmem:[%s4 + $0x78] sm:$0xff] %v1169
    %1202 = vst [vmem:[%s4 + $0x80] sm:$0xff] %v1170
    %1203 = vst [vmem:[%s4 + $0x88] sm:$0xff] %v1171
    %1204 = vst [vmem:[%s4 + $0x90] sm:$0xff] %v1172
    %1205 = vst [vmem:[%s4 + $0x98] sm:$0xff] %v1173
    %1206 = vst [vmem:[%s4 + $0xa0] sm:$0xff] %v1174
    %1207 = vst [vmem:[%s4 + $0xa8] sm:$0xff] %v1175
    %1208 = vst [vmem:[%s4 + $0xb0] sm:$0xff] %v1176
    %1209 = vst [vmem:[%s4 + $0xb8] sm:$0xff] %v1177
    %1210 = vst [vmem:[%s4 + $0xc0] sm:$0xff] %v1178
    %1211 = vst [vmem:[%s4 + $0xc8] sm:$0xff] %v1179
    %1212 = vst [vmem:[%s4 + $0xd0] sm:$0xff] %v1180
    %1213 = vst [vmem:[%s4 + $0xd8] sm:$0xff] %v1181
    %1214 = vst [vmem:[%s4 + $0xe0] sm:$0xff] %v1182
    %1215 = vst [vmem:[%s4 + $0xe8] sm:$0xff] %v1183
    %1216 = vst [vmem:[%s4 + $0xf0] sm:$0xff] %v1184
    %1217 = vst [vmem:[%s4 + $0xf8] sm:$0xff] %v1185
  $region25: #{gcn_forward.3} parent=0 // pred_fallthru
    _
  // Predicated region
  $region26: #{gcn_forward.3} parent=0 // pred_check
    _
  $region27: #{gcn_forward.3} parent=0 // pred_check_branch
    %1219 = sbr.rel (0) target = $region29
  $region28: #{gcn_forward.3} parent=0 // pred_region
    _
  $region29: #{gcn_forward.3} parent=0 // pred_fallthru
    _
  // Predicated region
  $region30: #{gcn_forward.3} parent=0 // pred_check
    _
  $region31: #{gcn_forward.3} parent=0 // pred_check_branch
    %1221 = sbr.rel (0) target = $region33
  $region32: #{gcn_forward.3} parent=0 // pred_region
    _
  $region33: #{gcn_forward.3} parent=0 // pred_fallthru
    _

</llo_original>
